<compile_context>
chip_gen: v5e
topology: v5e:2x2
jax: 0.10.0
libtpu: 0.0.40
codegen_flags: <defaults>
</compile_context>

<pallas_src>
import functools

import jax
import jax.numpy as jnp
from jax import lax
from jax.experimental import pallas as pl
from jax.experimental.pallas import tpu as pltpu

LANES = 128
SUBLANES = 8


def _round_up(x, m):
    return -(-x // m) * m


# ----------------------------------------------------------------------------
# Tap-pattern helpers (trace-time Python, tiny).
# ----------------------------------------------------------------------------
def _branch_offsets(ksize, band_ksize):
    r, b = ksize // 2, band_ksize // 2
    hw = tuple((di, dj) for di in range(-r, r + 1) for dj in range(-r, r + 1))
    w = tuple((0, dj) for dj in range(-b, b + 1))
    h = tuple((di, 0) for di in range(-b, b + 1))
    return hw, w, h


def _build_weight_table(params, union_offsets, cp, ch_start):
    """(T, cp) per-tap/per-channel weights + (1, cp) bias for the packed layout."""
    gc, ks, bks = params["gc"], params["ksize"], params["band_ksize"]
    r, b = ks // 2, bks // 2
    w_hw = params["w_hw"].reshape(gc, ks, ks).astype(jnp.float32)
    w_w = params["w_w"].reshape(gc, bks).astype(jnp.float32)
    w_h = params["w_h"].reshape(gc, bks).astype(jnp.float32)
    s_hw, s_w, s_h = ch_start["hw"], ch_start["w"], ch_start["h"]

    rows = []
    for (di, dj) in union_offsets:
        row = jnp.zeros((cp,), jnp.float32)
        if abs(di) <= r and abs(dj) <= r:
            row = row.at[s_hw:s_hw + gc].set(w_hw[:, di + r, dj + r])
        if di == 0 and abs(dj) <= b:
            row = row.at[s_w:s_w + gc].set(w_w[:, dj + b])
        if dj == 0 and abs(di) <= b:
            row = row.at[s_h:s_h + gc].set(w_h[:, di + b])
        rows.append(row)
    w_tbl = jnp.stack(rows, axis=0)

    bias = jnp.zeros((1, cp), jnp.float32)
    bias = bias.at[0, s_hw:s_hw + gc].set(params["b_hw"].astype(jnp.float32))
    bias = bias.at[0, s_w:s_w + gc].set(params["b_w"].astype(jnp.float32))
    bias = bias.at[0, s_h:s_h + gc].set(params["b_h"].astype(jnp.float32))
    return w_tbl, bias


def _pick_tiles(H, W, *, max_acc_vregs=28, w_tile_threshold=128):
    """Output strip (hblk, wblk): acc <= ~28 f32 vregs, W tiled only when big."""
    if W > w_tile_threshold:
        cands = [d for d in range(SUBLANES, w_tile_threshold + 1, SUBLANES)
                 if W % d == 0]
        wblk = max(cands) if cands else W
    else:
        wblk = W
    cw = -(-wblk // SUBLANES)
    cap = max(1, max_acc_vregs // cw)
    hblk = 1
    for d in range(1, H + 1):
        if H % d == 0 and d <= cap:
            hblk = d
    return hblk, wblk


# ----------------------------------------------------------------------------
# Pallas kernel: fused depthwise "inception" conv for one
# (batch, channel block, H-strip, W-tile).
# ----------------------------------------------------------------------------
def _fused_dwconv_kernel(w_ref, b_ref, x_ref, o_ref, *, groups, tap_row,
                         hblk, wblk, halo, pad_left):
    # w_ref: VMEM (T, 128)           per-tap, per-channel weights
    # b_ref: VMEM (1, 128)           per-channel bias
    # x_ref: VMEM (Hp, Wpad, 128)    zero-padded plane (reused across strips)
    # o_ref: VMEM (hblk, wblk, 128)  output strip (lane-dense store)
    cb = pl.program_id(1)
    h0 = pl.program_id(2) * hblk
    w0 = pl.program_id(3) * wblk
    if wblk % SUBLANES == 0:
        w0 = pl.multiple_of(w0, SUBLANES)

    def compute(taps):
        n_out_vregs = hblk * (-(-wblk // SUBLANES))
        n_accs = 2 if n_out_vregs < 8 else 1  # break 25-deep serial add chain
        # Accumulator initialized from the broadcast bias: no epilogue pass.
        accs = [jnp.broadcast_to(b_ref[...].astype(jnp.float32),
                                 (hblk, wblk, LANES))]
        if n_accs == 2:
            accs.append(jnp.zeros((hblk, wblk, LANES), jnp.float32))
        counter = [0]

        def mac(xs, t):
            wt = w_ref[t, :].astype(jnp.float32)
            i = counter[0] % n_accs
            accs[i] = accs[i] + xs * wt[None, None, :]
            counter[0] += 1

        dis = sorted({di for di, _ in taps})
        for di in dis:
            djs = sorted(dj for d, dj in taps if d == di)
            hrow = pl.ds(h0 + halo + di, hblk)
            if djs == [0]:
                # dj == 0: exact-width, sublane-aligned load; no shift needed.
                xs = x_ref[hrow, pl.ds(w0 + pad_left, wblk), :].astype(jnp.float32)
                mac(xs, tap_row[(di, 0)])
            else:
                # Load the wide row once (aligned start), cast to f32 once,
                # derive the dj shifts by re-slicing the vreg-resident row.
                width = pad_left + wblk + max(max(djs), 0)
                row = x_ref[hrow, pl.ds(w0, width), :].astype(jnp.float32)
                for dj in djs:
                    xs = row[:, pad_left + dj:pad_left + dj + wblk, :]
                    mac(xs, tap_row[(di, dj)])

        acc = accs[0]
        for extra in accs[1:]:
            acc = acc + extra
        o_ref[...] = acc.astype(o_ref.dtype)

    if len(groups) == 1:
        compute(groups[0][2])
    else:
        for lo, hi, taps in groups:
            @pl.when(jnp.logical_and(cb >= lo, cb < hi))
            def _(taps=taps):
                compute(taps)


# ----------------------------------------------------------------------------
# Parameters + forward pass
# ----------------------------------------------------------------------------
def init_inception_dwconv2d_params(key, c, ksize=3, band_ksize=11,
                                   branch_ratio=0.125):
    """Deterministic synthetic parameters matching nn.Conv2d weight/bias shapes."""
    gc = int(c * branch_ratio)
    k_hw, k_w, k_h, kb_hw, kb_w, kb_h = jax.random.split(key, 6)
    return {
        "gc": gc,
        "w_hw": jax.random.normal(k_hw, (gc, 1, ksize, ksize), jnp.float32) * 0.1,
        "w_w":  jax.random.normal(k_w,  (gc, 1, 1, band_ksize), jnp.float32) * 0.1,
        "w_h":  jax.random.normal(k_h,  (gc, 1, band_ksize, 1), jnp.float32) * 0.1,
        "b_hw": jax.random.normal(kb_hw, (gc,), jnp.float32) * 0.1,
        "b_w":  jax.random.normal(kb_w,  (gc,), jnp.float32) * 0.1,
        "b_h":  jax.random.normal(kb_h,  (gc,), jnp.float32) * 0.1,
        "ksize": ksize,
        "band_ksize": band_ksize,
    }


def inception_dwconv2d(x, params):
    """Forward pass matching InceptionDWConv2d.forward (NCHW in, NCHW out)."""
    N, C, H, W = x.shape
    gc = params["gc"]
    if gc == 0:                       # degenerate config: pure identity
        return x
    ks, bks = params["ksize"], params["band_ksize"]
    assert ks % 2 == 1 and bks % 2 == 1, \
        "even kernel sizes do not match PyTorch same-padding semantics"
    assert 3 * gc <= C, "branch_ratio too large: requires 3*gc <= C"
    n_id = C - 3 * gc
    halo = max(ks // 2, bks // 2)
    pad_left = _round_up(halo, SUBLANES)   # left halo padded to sublane multiple

    offs_hw, offs_w, offs_h = _branch_offsets(ks, bks)
    union = tuple(sorted(set(offs_hw) | set(offs_w) | set(offs_h)))
    tap_row = {o: i for i, o in enumerate(union)}
    T = len(union)

    # Channel packing: one lane-block with the union tap list when everything
    # fits in 128 lanes, otherwise one group of lane-blocks per branch so each
    # block only executes its own 9/11/11 taps.
    if 3 * gc <= LANES:
        cp = LANES
        gpad = gc
        ch_start = {"hw": 0, "w": gc, "h": 2 * gc}
        groups = ((0, 1, union),)
    else:
        gpad = _round_up(gc, LANES)
        cp = 3 * gpad
        nb = gpad // LANES
        ch_start = {"hw": 0, "w": gpad, "h": 2 * gpad}
        groups = ((0, nb, tuple(sorted(offs_hw))),
                  (nb, 2 * nb, tuple(sorted(offs_w))),
                  (2 * nb, 3 * nb, tuple(sorted(offs_h))))

    w_tbl, bias = _build_weight_table(params, union, cp, ch_start)

    # Layout glue: conv channels -> lanes, per-branch lane padding if needed,
    # spatial halo (left halo rounded up to 8 so dj==0 taps are aligned).
    x_hw = jnp.transpose(x[:, n_id:n_id + gc], (0, 2, 3, 1))
    x_w = jnp.transpose(x[:, n_id + gc:n_id + 2 * gc], (0, 2, 3, 1))
    x_h = jnp.transpose(x[:, n_id + 2 * gc:n_id + 3 * gc], (0, 2, 3, 1))
    parts = []
    for part in (x_hw, x_w, x_h):
        parts.append(part)
        if gpad > gc and cp == 3 * gpad:
            parts.append(jnp.zeros(part.shape[:-1] + (gpad - gc,), x.dtype))
    xc = jnp.concatenate(parts, axis=-1)

    Hp = H + 2 * halo
    Wpad = _round_up(W + pad_left + halo, SUBLANES)
    # TODO(synk): fusing this pad/transpose into the producing op (NHWC model
    # layout) would remove the extra HBM passes over the conv channels.
    xc = jnp.pad(xc, ((0, 0), (halo, halo), (pad_left, Wpad - W - pad_left),
                      (0, cp - xc.shape[-1])))

    hblk, wblk = _pick_tiles(H, W)
    grid = (N, cp // LANES, H // hblk, W // wblk)

    # VMEM budgeting: single-buffer the big reused plane when double-buffering
    # would not fit v7x's 64 MiB VMEM; always set an explicit limit.
    itemsize = jnp.dtype(x.dtype).itemsize
    plane_bytes = Hp * Wpad * LANES * itemsize
    x_spec_kwargs = {}
    if 2 * plane_bytes > (24 << 20):
        x_spec_kwargs["pipeline_mode"] = pl.Buffered(1)
    n_plane_bufs = 1 if x_spec_kwargs else 2
    need = (n_plane_bufs * plane_bytes
            + 2 * hblk * wblk * LANES * itemsize
            + 2 * (T + 1) * LANES * 4)
    vmem_limit = int(min(max(need + (4 << 20), 32 << 20), 120 << 20))

    kernel = functools.partial(_fused_dwconv_kernel, groups=groups,
                               tap_row=tap_row, hblk=hblk, wblk=wblk,
                               halo=halo, pad_left=pad_left)
    y = pl.pallas_call(
        kernel,
        out_shape=jax.ShapeDtypeStruct((N, H, W, cp), x.dtype),
        grid=grid,
        in_specs=[
            pl.BlockSpec((T, LANES), lambda n, cb, hb, wb: (0, cb)),       # weights
            pl.BlockSpec((1, LANES), lambda n, cb, hb, wb: (0, cb)),       # bias
            # Full padded plane per (n, cblock); block index is constant along
            # the strip/tile axes so it is DMA'd once and re-used.
            pl.BlockSpec((None, Hp, Wpad, LANES),
                         lambda n, cb, hb, wb: (n, 0, 0, cb), **x_spec_kwargs),
        ],
        out_specs=pl.BlockSpec((None, hblk, wblk, LANES),
                               lambda n, cb, hb, wb: (n, hb, wb, cb)),
        compiler_params=pltpu.CompilerParams(
            dimension_semantics=("parallel", "parallel", "parallel", "parallel"),
            vmem_limit_bytes=vmem_limit),
    )(w_tbl, bias, xc)

    if 3 * gc <= LANES:
        y = y[..., :3 * gc]
    else:
        y = jnp.concatenate([y[..., 0:gc],
                             y[..., gpad:gpad + gc],
                             y[..., 2 * gpad:2 * gpad + gc]], axis=-1)
    y = jnp.transpose(y, (0, 3, 1, 2))                      # (N, 3gc, H, W)
    # Identity channels are never copied by the kernel; under jit with a
    # donated input this update happens in place.
    return lax.dynamic_update_slice(x, y, (0, n_id, 0, 0))


# ----------------------------------------------------------------------------
# Pure-JAX reference
# ----------------------------------------------------------------------------
def _ref_dwconv(x, w4, b, kh, kw):
    out = lax.conv_general_dilated(
        x, w4, window_strides=(1, 1),
        padding=[(kh // 2, kh // 2), (kw // 2, kw // 2)],
        dimension_numbers=("NCHW", "OIHW", "NCHW"),
        feature_group_count=x.shape[1])
    return out + b[None, :, None, None]


def _ref_forward(x, params):
    c = x.shape[1]
    gc, ks, bks = params["gc"], params["ksize"], params["band_ksize"]
    n_id = c - 3 * gc
    x_id = x[:, :n_id]
    x_hw = x[:, n_id:n_id + gc]
    x_w = x[:, n_id + gc:n_id + 2 * gc]
    x_h = x[:, n_id + 2 * gc:]
    return jnp.concatenate([
        x_id,
        _ref_dwconv(x_hw, params["w_hw"], params["b_hw"], ks, ks),
        _ref_dwconv(x_w, params["w_w"], params["b_w"], 1, bks),
        _ref_dwconv(x_h, params["w_h"], params["b_h"], bks, 1),
    ], axis=1)


if __name__ == "__main__":
    # c=32, branch_ratio=0.125 -> gc=4, split = [20, 4, 4, 4]
    N, C, H, W = 2, 32, 16, 16
    key = jax.random.PRNGKey(0)
    kx, kp = jax.random.split(key)
    x = jax.random.normal(kx, (N, C, H, W), jnp.float32)
    params = init_inception_dwconv2d_params(kp, C, ksize=3, band_ksize=11,
                                            branch_ratio=0.125)

    fwd = jax.jit(functools.partial(inception_dwconv2d, params=params))
    out = jax.block_until_ready(fwd(x))
    ref = jax.block_until_ready(_ref_forward(x, params))

    assert out.shape == (N, C, H, W), out.shape
    err = float(jnp.max(jnp.abs(out - ref)))
    assert jnp.allclose(out, ref, rtol=1e-5, atol=1e-5), err

    print("KERNEL_OK")
</pallas_src>

<mosaic_0001>
module attributes {stable_mosaic.version = 11 : i64} {
  func.func @_fused_dwconv_kernel(%arg0: i32, %arg1: i32, %arg2: i32, %arg3: i32, %arg4: memref<25x128xf32, #tpu.memory_space<vmem>>, %arg5: memref<1x128xf32, #tpu.memory_space<vmem>>, %arg6: memref<1x26x32x128xf32, #tpu.memory_space<vmem>>, %arg7: memref<1x8x16x128xf32, #tpu.memory_space<vmem>>) attributes {dimension_semantics = [#tpu.dimension_semantics<parallel>, #tpu.dimension_semantics<parallel>, #tpu.dimension_semantics<parallel>, #tpu.dimension_semantics<parallel>], iteration_bounds = array<i64: 2, 1, 2, 1>, scalar_prefetch = 0 : i64, scratch_operands = 0 : i64, tpu.core_type = #tpu.core_type<tc>, window_params = [{transform_indices = @transform_0, window_bounds = array<i64: 25, 128>}, {transform_indices = @transform_1, window_bounds = array<i64: 1, 128>}, {transform_indices = @transform_2, window_bounds = array<i64: 1, 26, 32, 128>}, {transform_indices = @transform_3, window_bounds = array<i64: 1, 8, 16, 128>}]} {
    %c8_i32 = arith.constant 8 : i32
    %0 = arith.muli %arg2, %c8_i32 : i32
    %c16_i32 = arith.constant 16 : i32
    %1 = arith.muli %arg3, %c16_i32 : i32
    %2 = tpu.assume_multiple %1, 8 : i32
    %c0 = arith.constant 0 : index
    %c0_0 = arith.constant 0 : index
    %3 = vector.load %arg5[%c0, %c0_0] : memref<1x128xf32, #tpu.memory_space<vmem>>, vector<1x128xf32>
    %4 = vector.shape_cast %3 : vector<1x128xf32> to vector<1x1x128xf32>
    %5 = vector.broadcast %4 : vector<1x1x128xf32> to vector<8x16x128xf32>
    %c5_i32 = arith.constant 5 : i32
    %6 = arith.addi %0, %c5_i32 : i32
    %c-5_i32 = arith.constant -5 : i32
    %7 = arith.addi %6, %c-5_i32 : i32
    %c8_i32_1 = arith.constant 8 : i32
    %8 = arith.addi %2, %c8_i32_1 : i32
    %c0_2 = arith.constant 0 : index
    %9 = arith.index_cast %7 : i32 to index
    %10 = arith.index_cast %8 : i32 to index
    %c0_3 = arith.constant 0 : index
    %11 = vector.load %arg6[%c0_2, %9, %10, %c0_3] : memref<1x26x32x128xf32, #tpu.memory_space<vmem>>, vector<1x8x16x128xf32>
    %12 = vector.shape_cast %11 : vector<1x8x16x128xf32> to vector<8x16x128xf32>
    %c0_4 = arith.constant 0 : index
    %c0_5 = arith.constant 0 : index
    %13 = vector.load %arg4[%c0_4, %c0_5] : memref<25x128xf32, #tpu.memory_space<vmem>>, vector<1x128xf32>
    %14 = vector.shape_cast %13 : vector<1x128xf32> to vector<128xf32>
    %15 = vector.shape_cast %14 : vector<128xf32> to vector<1x1x128xf32>
    %16 = vector.broadcast %15 : vector<1x1x128xf32> to vector<8x16x128xf32>
    %17 = arith.mulf %12, %16 : vector<8x16x128xf32>
    %18 = arith.addf %5, %17 : vector<8x16x128xf32>
    %c5_i32_6 = arith.constant 5 : i32
    %19 = arith.addi %0, %c5_i32_6 : i32
    %c-4_i32 = arith.constant -4 : i32
    %20 = arith.addi %19, %c-4_i32 : i32
    %c8_i32_7 = arith.constant 8 : i32
    %21 = arith.addi %2, %c8_i32_7 : i32
    %c0_8 = arith.constant 0 : index
    %22 = arith.index_cast %20 : i32 to index
    %23 = arith.index_cast %21 : i32 to index
    %c0_9 = arith.constant 0 : index
    %24 = vector.load %arg6[%c0_8, %22, %23, %c0_9] : memref<1x26x32x128xf32, #tpu.memory_space<vmem>>, vector<1x8x16x128xf32>
    %25 = vector.shape_cast %24 : vector<1x8x16x128xf32> to vector<8x16x128xf32>
    %c1 = arith.constant 1 : index
    %c0_10 = arith.constant 0 : index
    %26 = vector.load %arg4[%c1, %c0_10] : memref<25x128xf32, #tpu.memory_space<vmem>>, vector<1x128xf32>
    %27 = vector.shape_cast %26 : vector<1x128xf32> to vector<128xf32>
    %28 = vector.shape_cast %27 : vector<128xf32> to vector<1x1x128xf32>
    %29 = vector.broadcast %28 : vector<1x1x128xf32> to vector<8x16x128xf32>
    %30 = arith.mulf %25, %29 : vector<8x16x128xf32>
    %31 = arith.addf %18, %30 : vector<8x16x128xf32>
    %c5_i32_11 = arith.constant 5 : i32
    %32 = arith.addi %0, %c5_i32_11 : i32
    %c-3_i32 = arith.constant -3 : i32
    %33 = arith.addi %32, %c-3_i32 : i32
    %c8_i32_12 = arith.constant 8 : i32
    %34 = arith.addi %2, %c8_i32_12 : i32
    %c0_13 = arith.constant 0 : index
    %35 = arith.index_cast %33 : i32 to index
    %36 = arith.index_cast %34 : i32 to index
    %c0_14 = arith.constant 0 : index
    %37 = vector.load %arg6[%c0_13, %35, %36, %c0_14] : memref<1x26x32x128xf32, #tpu.memory_space<vmem>>, vector<1x8x16x128xf32>
    %38 = vector.shape_cast %37 : vector<1x8x16x128xf32> to vector<8x16x128xf32>
    %c2 = arith.constant 2 : index
    %c0_15 = arith.constant 0 : index
    %39 = vector.load %arg4[%c2, %c0_15] : memref<25x128xf32, #tpu.memory_space<vmem>>, vector<1x128xf32>
    %40 = vector.shape_cast %39 : vector<1x128xf32> to vector<128xf32>
    %41 = vector.shape_cast %40 : vector<128xf32> to vector<1x1x128xf32>
    %42 = vector.broadcast %41 : vector<1x1x128xf32> to vector<8x16x128xf32>
    %43 = arith.mulf %38, %42 : vector<8x16x128xf32>
    %44 = arith.addf %31, %43 : vector<8x16x128xf32>
    %c5_i32_16 = arith.constant 5 : i32
    %45 = arith.addi %0, %c5_i32_16 : i32
    %c-2_i32 = arith.constant -2 : i32
    %46 = arith.addi %45, %c-2_i32 : i32
    %c8_i32_17 = arith.constant 8 : i32
    %47 = arith.addi %2, %c8_i32_17 : i32
    %c0_18 = arith.constant 0 : index
    %48 = arith.index_cast %46 : i32 to index
    %49 = arith.index_cast %47 : i32 to index
    %c0_19 = arith.constant 0 : index
    %50 = vector.load %arg6[%c0_18, %48, %49, %c0_19] : memref<1x26x32x128xf32, #tpu.memory_space<vmem>>, vector<1x8x16x128xf32>
    %51 = vector.shape_cast %50 : vector<1x8x16x128xf32> to vector<8x16x128xf32>
    %c3 = arith.constant 3 : index
    %c0_20 = arith.constant 0 : index
    %52 = vector.load %arg4[%c3, %c0_20] : memref<25x128xf32, #tpu.memory_space<vmem>>, vector<1x128xf32>
    %53 = vector.shape_cast %52 : vector<1x128xf32> to vector<128xf32>
    %54 = vector.shape_cast %53 : vector<128xf32> to vector<1x1x128xf32>
    %55 = vector.broadcast %54 : vector<1x1x128xf32> to vector<8x16x128xf32>
    %56 = arith.mulf %51, %55 : vector<8x16x128xf32>
    %57 = arith.addf %44, %56 : vector<8x16x128xf32>
    %c5_i32_21 = arith.constant 5 : i32
    %58 = arith.addi %0, %c5_i32_21 : i32
    %c-1_i32 = arith.constant -1 : i32
    %59 = arith.addi %58, %c-1_i32 : i32
    %c0_22 = arith.constant 0 : index
    %60 = arith.index_cast %59 : i32 to index
    %61 = arith.index_cast %2 : i32 to index
    %c0_23 = arith.constant 0 : index
    %62 = vector.load %arg6[%c0_22, %60, %61, %c0_23] : memref<1x26x32x128xf32, #tpu.memory_space<vmem>>, vector<1x8x25x128xf32>
    %63 = vector.shape_cast %62 : vector<1x8x25x128xf32> to vector<8x25x128xf32>
    %64 = vector.extract_strided_slice %63 {offsets = [0, 7, 0], sizes = [8, 16, 128], strides = [1, 1, 1]} : vector<8x25x128xf32> to vector<8x16x128xf32>
    %c4 = arith.constant 4 : index
    %c0_24 = arith.constant 0 : index
    %65 = vector.load %arg4[%c4, %c0_24] : memref<25x128xf32, #tpu.memory_space<vmem>>, vector<1x128xf32>
    %66 = vector.shape_cast %65 : vector<1x128xf32> to vector<128xf32>
    %67 = vector.shape_cast %66 : vector<128xf32> to vector<1x1x128xf32>
    %68 = vector.broadcast %67 : vector<1x1x128xf32> to vector<8x16x128xf32>
    %69 = arith.mulf %64, %68 : vector<8x16x128xf32>
    %70 = arith.addf %57, %69 : vector<8x16x128xf32>
    %71 = vector.extract_strided_slice %63 {offsets = [0, 8, 0], sizes = [8, 16, 128], strides = [1, 1, 1]} : vector<8x25x128xf32> to vector<8x16x128xf32>
    %c5 = arith.constant 5 : index
    %c0_25 = arith.constant 0 : index
    %72 = vector.load %arg4[%c5, %c0_25] : memref<25x128xf32, #tpu.memory_space<vmem>>, vector<1x128xf32>
    %73 = vector.shape_cast %72 : vector<1x128xf32> to vector<128xf32>
    %74 = vector.shape_cast %73 : vector<128xf32> to vector<1x1x128xf32>
    %75 = vector.broadcast %74 : vector<1x1x128xf32> to vector<8x16x128xf32>
    %76 = arith.mulf %71, %75 : vector<8x16x128xf32>
    %77 = arith.addf %70, %76 : vector<8x16x128xf32>
    %78 = vector.extract_strided_slice %63 {offsets = [0, 9, 0], sizes = [8, 16, 128], strides = [1, 1, 1]} : vector<8x25x128xf32> to vector<8x16x128xf32>
    %c6 = arith.constant 6 : index
    %c0_26 = arith.constant 0 : index
    %79 = vector.load %arg4[%c6, %c0_26] : memref<25x128xf32, #tpu.memory_space<vmem>>, vector<1x128xf32>
    %80 = vector.shape_cast %79 : vector<1x128xf32> to vector<128xf32>
    %81 = vector.shape_cast %80 : vector<128xf32> to vector<1x1x128xf32>
    %82 = vector.broadcast %81 : vector<1x1x128xf32> to vector<8x16x128xf32>
    %83 = arith.mulf %78, %82 : vector<8x16x128xf32>
    %84 = arith.addf %77, %83 : vector<8x16x128xf32>
    %c5_i32_27 = arith.constant 5 : i32
    %85 = arith.addi %0, %c5_i32_27 : i32
    %c0_i32 = arith.constant 0 : i32
    %86 = arith.addi %85, %c0_i32 : i32
    %c0_28 = arith.constant 0 : index
    %87 = arith.index_cast %86 : i32 to index
    %88 = arith.index_cast %2 : i32 to index
    %c0_29 = arith.constant 0 : index
    %89 = vector.load %arg6[%c0_28, %87, %88, %c0_29] : memref<1x26x32x128xf32, #tpu.memory_space<vmem>>, vector<1x8x29x128xf32>
    %90 = vector.shape_cast %89 : vector<1x8x29x128xf32> to vector<8x29x128xf32>
    %91 = vector.extract_strided_slice %90 {offsets = [0, 3, 0], sizes = [8, 16, 128], strides = [1, 1, 1]} : vector<8x29x128xf32> to vector<8x16x128xf32>
    %c7 = arith.constant 7 : index
    %c0_30 = arith.constant 0 : index
    %92 = vector.load %arg4[%c7, %c0_30] : memref<25x128xf32, #tpu.memory_space<vmem>>, vector<1x128xf32>
    %93 = vector.shape_cast %92 : vector<1x128xf32> to vector<128xf32>
    %94 = vector.shape_cast %93 : vector<128xf32> to vector<1x1x128xf32>
    %95 = vector.broadcast %94 : vector<1x1x128xf32> to vector<8x16x128xf32>
    %96 = arith.mulf %91, %95 : vector<8x16x128xf32>
    %97 = arith.addf %84, %96 : vector<8x16x128xf32>
    %98 = vector.extract_strided_slice %90 {offsets = [0, 4, 0], sizes = [8, 16, 128], strides = [1, 1, 1]} : vector<8x29x128xf32> to vector<8x16x128xf32>
    %c8 = arith.constant 8 : index
    %c0_31 = arith.constant 0 : index
    %99 = vector.load %arg4[%c8, %c0_31] : memref<25x128xf32, #tpu.memory_space<vmem>>, vector<1x128xf32>
    %100 = vector.shape_cast %99 : vector<1x128xf32> to vector<128xf32>
    %101 = vector.shape_cast %100 : vector<128xf32> to vector<1x1x128xf32>
    %102 = vector.broadcast %101 : vector<1x1x128xf32> to vector<8x16x128xf32>
    %103 = arith.mulf %98, %102 : vector<8x16x128xf32>
    %104 = arith.addf %97, %103 : vector<8x16x128xf32>
    %105 = vector.extract_strided_slice %90 {offsets = [0, 5, 0], sizes = [8, 16, 128], strides = [1, 1, 1]} : vector<8x29x128xf32> to vector<8x16x128xf32>
    %c9 = arith.constant 9 : index
    %c0_32 = arith.constant 0 : index
    %106 = vector.load %arg4[%c9, %c0_32] : memref<25x128xf32, #tpu.memory_space<vmem>>, vector<1x128xf32>
    %107 = vector.shape_cast %106 : vector<1x128xf32> to vector<128xf32>
    %108 = vector.shape_cast %107 : vector<128xf32> to vector<1x1x128xf32>
    %109 = vector.broadcast %108 : vector<1x1x128xf32> to vector<8x16x128xf32>
    %110 = arith.mulf %105, %109 : vector<8x16x128xf32>
    %111 = arith.addf %104, %110 : vector<8x16x128xf32>
    %112 = vector.extract_strided_slice %90 {offsets = [0, 6, 0], sizes = [8, 16, 128], strides = [1, 1, 1]} : vector<8x29x128xf32> to vector<8x16x128xf32>
    %c10 = arith.constant 10 : index
    %c0_33 = arith.constant 0 : index
    %113 = vector.load %arg4[%c10, %c0_33] : memref<25x128xf32, #tpu.memory_space<vmem>>, vector<1x128xf32>
    %114 = vector.shape_cast %113 : vector<1x128xf32> to vector<128xf32>
    %115 = vector.shape_cast %114 : vector<128xf32> to vector<1x1x128xf32>
    %116 = vector.broadcast %115 : vector<1x1x128xf32> to vector<8x16x128xf32>
    %117 = arith.mulf %112, %116 : vector<8x16x128xf32>
    %118 = arith.addf %111, %117 : vector<8x16x128xf32>
    %119 = vector.extract_strided_slice %90 {offsets = [0, 7, 0], sizes = [8, 16, 128], strides = [1, 1, 1]} : vector<8x29x128xf32> to vector<8x16x128xf32>
    %c11 = arith.constant 11 : index
    %c0_34 = arith.constant 0 : index
    %120 = vector.load %arg4[%c11, %c0_34] : memref<25x128xf32, #tpu.memory_space<vmem>>, vector<1x128xf32>
    %121 = vector.shape_cast %120 : vector<1x128xf32> to vector<128xf32>
    %122 = vector.shape_cast %121 : vector<128xf32> to vector<1x1x128xf32>
    %123 = vector.broadcast %122 : vector<1x1x128xf32> to vector<8x16x128xf32>
    %124 = arith.mulf %119, %123 : vector<8x16x128xf32>
    %125 = arith.addf %118, %124 : vector<8x16x128xf32>
    %126 = vector.extract_strided_slice %90 {offsets = [0, 8, 0], sizes = [8, 16, 128], strides = [1, 1, 1]} : vector<8x29x128xf32> to vector<8x16x128xf32>
    %c12 = arith.constant 12 : index
    %c0_35 = arith.constant 0 : index
    %127 = vector.load %arg4[%c12, %c0_35] : memref<25x128xf32, #tpu.memory_space<vmem>>, vector<1x128xf32>
    %128 = vector.shape_cast %127 : vector<1x128xf32> to vector<128xf32>
    %129 = vector.shape_cast %128 : vector<128xf32> to vector<1x1x128xf32>
    %130 = vector.broadcast %129 : vector<1x1x128xf32> to vector<8x16x128xf32>
    %131 = arith.mulf %126, %130 : vector<8x16x128xf32>
    %132 = arith.addf %125, %131 : vector<8x16x128xf32>
    %133 = vector.extract_strided_slice %90 {offsets = [0, 9, 0], sizes = [8, 16, 128], strides = [1, 1, 1]} : vector<8x29x128xf32> to vector<8x16x128xf32>
    %c13 = arith.constant 13 : index
    %c0_36 = arith.constant 0 : index
    %134 = vector.load %arg4[%c13, %c0_36] : memref<25x128xf32, #tpu.memory_space<vmem>>, vector<1x128xf32>
    %135 = vector.shape_cast %134 : vector<1x128xf32> to vector<128xf32>
    %136 = vector.shape_cast %135 : vector<128xf32> to vector<1x1x128xf32>
    %137 = vector.broadcast %136 : vector<1x1x128xf32> to vector<8x16x128xf32>
    %138 = arith.mulf %133, %137 : vector<8x16x128xf32>
    %139 = arith.addf %132, %138 : vector<8x16x128xf32>
    %140 = vector.extract_strided_slice %90 {offsets = [0, 10, 0], sizes = [8, 16, 128], strides = [1, 1, 1]} : vector<8x29x128xf32> to vector<8x16x128xf32>
    %c14 = arith.constant 14 : index
    %c0_37 = arith.constant 0 : index
    %141 = vector.load %arg4[%c14, %c0_37] : memref<25x128xf32, #tpu.memory_space<vmem>>, vector<1x128xf32>
    %142 = vector.shape_cast %141 : vector<1x128xf32> to vector<128xf32>
    %143 = vector.shape_cast %142 : vector<128xf32> to vector<1x1x128xf32>
    %144 = vector.broadcast %143 : vector<1x1x128xf32> to vector<8x16x128xf32>
    %145 = arith.mulf %140, %144 : vector<8x16x128xf32>
    %146 = arith.addf %139, %145 : vector<8x16x128xf32>
    %147 = vector.extract_strided_slice %90 {offsets = [0, 11, 0], sizes = [8, 16, 128], strides = [1, 1, 1]} : vector<8x29x128xf32> to vector<8x16x128xf32>
    %c15 = arith.constant 15 : index
    %c0_38 = arith.constant 0 : index
    %148 = vector.load %arg4[%c15, %c0_38] : memref<25x128xf32, #tpu.memory_space<vmem>>, vector<1x128xf32>
    %149 = vector.shape_cast %148 : vector<1x128xf32> to vector<128xf32>
    %150 = vector.shape_cast %149 : vector<128xf32> to vector<1x1x128xf32>
    %151 = vector.broadcast %150 : vector<1x1x128xf32> to vector<8x16x128xf32>
    %152 = arith.mulf %147, %151 : vector<8x16x128xf32>
    %153 = arith.addf %146, %152 : vector<8x16x128xf32>
    %154 = vector.extract_strided_slice %90 {offsets = [0, 12, 0], sizes = [8, 16, 128], strides = [1, 1, 1]} : vector<8x29x128xf32> to vector<8x16x128xf32>
    %c16 = arith.constant 16 : index
    %c0_39 = arith.constant 0 : index
    %155 = vector.load %arg4[%c16, %c0_39] : memref<25x128xf32, #tpu.memory_space<vmem>>, vector<1x128xf32>
    %156 = vector.shape_cast %155 : vector<1x128xf32> to vector<128xf32>
    %157 = vector.shape_cast %156 : vector<128xf32> to vector<1x1x128xf32>
    %158 = vector.broadcast %157 : vector<1x1x128xf32> to vector<8x16x128xf32>
    %159 = arith.mulf %154, %158 : vector<8x16x128xf32>
    %160 = arith.addf %153, %159 : vector<8x16x128xf32>
    %161 = vector.extract_strided_slice %90 {offsets = [0, 13, 0], sizes = [8, 16, 128], strides = [1, 1, 1]} : vector<8x29x128xf32> to vector<8x16x128xf32>
    %c17 = arith.constant 17 : index
    %c0_40 = arith.constant 0 : index
    %162 = vector.load %arg4[%c17, %c0_40] : memref<25x128xf32, #tpu.memory_space<vmem>>, vector<1x128xf32>
    %163 = vector.shape_cast %162 : vector<1x128xf32> to vector<128xf32>
    %164 = vector.shape_cast %163 : vector<128xf32> to vector<1x1x128xf32>
    %165 = vector.broadcast %164 : vector<1x1x128xf32> to vector<8x16x128xf32>
    %166 = arith.mulf %161, %165 : vector<8x16x128xf32>
    %167 = arith.addf %160, %166 : vector<8x16x128xf32>
    %c5_i32_41 = arith.constant 5 : i32
    %168 = arith.addi %0, %c5_i32_41 : i32
    %c1_i32 = arith.constant 1 : i32
    %169 = arith.addi %168, %c1_i32 : i32
    %c0_42 = arith.constant 0 : index
    %170 = arith.index_cast %169 : i32 to index
    %171 = arith.index_cast %2 : i32 to index
    %c0_43 = arith.constant 0 : index
    %172 = vector.load %arg6[%c0_42, %170, %171, %c0_43] : memref<1x26x32x128xf32, #tpu.memory_space<vmem>>, vector<1x8x25x128xf32>
    %173 = vector.shape_cast %172 : vector<1x8x25x128xf32> to vector<8x25x128xf32>
    %174 = vector.extract_strided_slice %173 {offsets = [0, 7, 0], sizes = [8, 16, 128], strides = [1, 1, 1]} : vector<8x25x128xf32> to vector<8x16x128xf32>
    %c18 = arith.constant 18 : index
    %c0_44 = arith.constant 0 : index
    %175 = vector.load %arg4[%c18, %c0_44] : memref<25x128xf32, #tpu.memory_space<vmem>>, vector<1x128xf32>
    %176 = vector.shape_cast %175 : vector<1x128xf32> to vector<128xf32>
    %177 = vector.shape_cast %176 : vector<128xf32> to vector<1x1x128xf32>
    %178 = vector.broadcast %177 : vector<1x1x128xf32> to vector<8x16x128xf32>
    %179 = arith.mulf %174, %178 : vector<8x16x128xf32>
    %180 = arith.addf %167, %179 : vector<8x16x128xf32>
    %181 = vector.extract_strided_slice %173 {offsets = [0, 8, 0], sizes = [8, 16, 128], strides = [1, 1, 1]} : vector<8x25x128xf32> to vector<8x16x128xf32>
    %c19 = arith.constant 19 : index
    %c0_45 = arith.constant 0 : index
    %182 = vector.load %arg4[%c19, %c0_45] : memref<25x128xf32, #tpu.memory_space<vmem>>, vector<1x128xf32>
    %183 = vector.shape_cast %182 : vector<1x128xf32> to vector<128xf32>
    %184 = vector.shape_cast %183 : vector<128xf32> to vector<1x1x128xf32>
    %185 = vector.broadcast %184 : vector<1x1x128xf32> to vector<8x16x128xf32>
    %186 = arith.mulf %181, %185 : vector<8x16x128xf32>
    %187 = arith.addf %180, %186 : vector<8x16x128xf32>
    %188 = vector.extract_strided_slice %173 {offsets = [0, 9, 0], sizes = [8, 16, 128], strides = [1, 1, 1]} : vector<8x25x128xf32> to vector<8x16x128xf32>
    %c20 = arith.constant 20 : index
    %c0_46 = arith.constant 0 : index
    %189 = vector.load %arg4[%c20, %c0_46] : memref<25x128xf32, #tpu.memory_space<vmem>>, vector<1x128xf32>
    %190 = vector.shape_cast %189 : vector<1x128xf32> to vector<128xf32>
    %191 = vector.shape_cast %190 : vector<128xf32> to vector<1x1x128xf32>
    %192 = vector.broadcast %191 : vector<1x1x128xf32> to vector<8x16x128xf32>
    %193 = arith.mulf %188, %192 : vector<8x16x128xf32>
    %194 = arith.addf %187, %193 : vector<8x16x128xf32>
    %c5_i32_47 = arith.constant 5 : i32
    %195 = arith.addi %0, %c5_i32_47 : i32
    %c2_i32 = arith.constant 2 : i32
    %196 = arith.addi %195, %c2_i32 : i32
    %c8_i32_48 = arith.constant 8 : i32
    %197 = arith.addi %2, %c8_i32_48 : i32
    %c0_49 = arith.constant 0 : index
    %198 = arith.index_cast %196 : i32 to index
    %199 = arith.index_cast %197 : i32 to index
    %c0_50 = arith.constant 0 : index
    %200 = vector.load %arg6[%c0_49, %198, %199, %c0_50] : memref<1x26x32x128xf32, #tpu.memory_space<vmem>>, vector<1x8x16x128xf32>
    %201 = vector.shape_cast %200 : vector<1x8x16x128xf32> to vector<8x16x128xf32>
    %c21 = arith.constant 21 : index
    %c0_51 = arith.constant 0 : index
    %202 = vector.load %arg4[%c21, %c0_51] : memref<25x128xf32, #tpu.memory_space<vmem>>, vector<1x128xf32>
    %203 = vector.shape_cast %202 : vector<1x128xf32> to vector<128xf32>
    %204 = vector.shape_cast %203 : vector<128xf32> to vector<1x1x128xf32>
    %205 = vector.broadcast %204 : vector<1x1x128xf32> to vector<8x16x128xf32>
    %206 = arith.mulf %201, %205 : vector<8x16x128xf32>
    %207 = arith.addf %194, %206 : vector<8x16x128xf32>
    %c5_i32_52 = arith.constant 5 : i32
    %208 = arith.addi %0, %c5_i32_52 : i32
    %c3_i32 = arith.constant 3 : i32
    %209 = arith.addi %208, %c3_i32 : i32
    %c8_i32_53 = arith.constant 8 : i32
    %210 = arith.addi %2, %c8_i32_53 : i32
    %c0_54 = arith.constant 0 : index
    %211 = arith.index_cast %209 : i32 to index
    %212 = arith.index_cast %210 : i32 to index
    %c0_55 = arith.constant 0 : index
    %213 = vector.load %arg6[%c0_54, %211, %212, %c0_55] : memref<1x26x32x128xf32, #tpu.memory_space<vmem>>, vector<1x8x16x128xf32>
    %214 = vector.shape_cast %213 : vector<1x8x16x128xf32> to vector<8x16x128xf32>
    %c22 = arith.constant 22 : index
    %c0_56 = arith.constant 0 : index
    %215 = vector.load %arg4[%c22, %c0_56] : memref<25x128xf32, #tpu.memory_space<vmem>>, vector<1x128xf32>
    %216 = vector.shape_cast %215 : vector<1x128xf32> to vector<128xf32>
    %217 = vector.shape_cast %216 : vector<128xf32> to vector<1x1x128xf32>
    %218 = vector.broadcast %217 : vector<1x1x128xf32> to vector<8x16x128xf32>
    %219 = arith.mulf %214, %218 : vector<8x16x128xf32>
    %220 = arith.addf %207, %219 : vector<8x16x128xf32>
    %c5_i32_57 = arith.constant 5 : i32
    %221 = arith.addi %0, %c5_i32_57 : i32
    %c4_i32 = arith.constant 4 : i32
    %222 = arith.addi %221, %c4_i32 : i32
    %c8_i32_58 = arith.constant 8 : i32
    %223 = arith.addi %2, %c8_i32_58 : i32
    %c0_59 = arith.constant 0 : index
    %224 = arith.index_cast %222 : i32 to index
    %225 = arith.index_cast %223 : i32 to index
    %c0_60 = arith.constant 0 : index
    %226 = vector.load %arg6[%c0_59, %224, %225, %c0_60] : memref<1x26x32x128xf32, #tpu.memory_space<vmem>>, vector<1x8x16x128xf32>
    %227 = vector.shape_cast %226 : vector<1x8x16x128xf32> to vector<8x16x128xf32>
    %c23 = arith.constant 23 : index
    %c0_61 = arith.constant 0 : index
    %228 = vector.load %arg4[%c23, %c0_61] : memref<25x128xf32, #tpu.memory_space<vmem>>, vector<1x128xf32>
    %229 = vector.shape_cast %228 : vector<1x128xf32> to vector<128xf32>
    %230 = vector.shape_cast %229 : vector<128xf32> to vector<1x1x128xf32>
    %231 = vector.broadcast %230 : vector<1x1x128xf32> to vector<8x16x128xf32>
    %232 = arith.mulf %227, %231 : vector<8x16x128xf32>
    %233 = arith.addf %220, %232 : vector<8x16x128xf32>
    %c5_i32_62 = arith.constant 5 : i32
    %234 = arith.addi %0, %c5_i32_62 : i32
    %c5_i32_63 = arith.constant 5 : i32
    %235 = arith.addi %234, %c5_i32_63 : i32
    %c8_i32_64 = arith.constant 8 : i32
    %236 = arith.addi %2, %c8_i32_64 : i32
    %c0_65 = arith.constant 0 : index
    %237 = arith.index_cast %235 : i32 to index
    %238 = arith.index_cast %236 : i32 to index
    %c0_66 = arith.constant 0 : index
    %239 = vector.load %arg6[%c0_65, %237, %238, %c0_66] : memref<1x26x32x128xf32, #tpu.memory_space<vmem>>, vector<1x8x16x128xf32>
    %240 = vector.shape_cast %239 : vector<1x8x16x128xf32> to vector<8x16x128xf32>
    %c24 = arith.constant 24 : index
    %c0_67 = arith.constant 0 : index
    %241 = vector.load %arg4[%c24, %c0_67] : memref<25x128xf32, #tpu.memory_space<vmem>>, vector<1x128xf32>
    %242 = vector.shape_cast %241 : vector<1x128xf32> to vector<128xf32>
    %243 = vector.shape_cast %242 : vector<128xf32> to vector<1x1x128xf32>
    %244 = vector.broadcast %243 : vector<1x1x128xf32> to vector<8x16x128xf32>
    %245 = arith.mulf %240, %244 : vector<8x16x128xf32>
    %246 = arith.addf %233, %245 : vector<8x16x128xf32>
    %c0_68 = arith.constant 0 : index
    %c0_69 = arith.constant 0 : index
    %c0_70 = arith.constant 0 : index
    %c0_71 = arith.constant 0 : index
    %247 = vector.load %arg7[%c0_68, %c0_69, %c0_70, %c0_71] : memref<1x8x16x128xf32, #tpu.memory_space<vmem>>, vector<1x8x16x128xf32>
    %248 = vector.shape_cast %247 : vector<1x8x16x128xf32> to vector<8x16x128xf32>
    %249 = vector.shape_cast %246 : vector<8x16x128xf32> to vector<1x8x16x128xf32>
    tpu.vector_store %arg7[%c0_68, %c0_69, %c0_70, %c0_71], %249 {strides = array<i32>} : memref<1x8x16x128xf32, #tpu.memory_space<vmem>>, vector<1x8x16x128xf32>,
    return
  }
  func.func @transform_0(%arg0: i32, %arg1: i32, %arg2: i32, %arg3: i32) -> (i32, i32) {
    %c0_i32 = arith.constant 0 : i32
    %c0_i32_0 = arith.constant 0 : i32
    return %c0_i32, %arg1 : i32, i32
  }
  func.func @transform_1(%arg0: i32, %arg1: i32, %arg2: i32, %arg3: i32) -> (i32, i32) {
    %c0_i32 = arith.constant 0 : i32
    %c0_i32_0 = arith.constant 0 : i32
    return %c0_i32, %arg1 : i32, i32
  }
  func.func @transform_2(%arg0: i32, %arg1: i32, %arg2: i32, %arg3: i32) -> (i32, i32, i32, i32) {
    %c0_i32 = arith.constant 0 : i32
    %c0_i32_0 = arith.constant 0 : i32
    %c0_i32_1 = arith.constant 0 : i32
    return %arg0, %c0_i32, %c0_i32_0, %arg1 : i32, i32, i32, i32
  }
  func.func @transform_3(%arg0: i32, %arg1: i32, %arg2: i32, %arg3: i32) -> (i32, i32, i32, i32) {
    %c0_i32 = arith.constant 0 : i32
    return %arg0, %arg2, %arg3, %arg1 : i32, i32, i32, i32
  }
}

</mosaic_0001>

<llo_original>
// kernel: inception_dwconv2d.1
$region0: #{inception_dwconv2d.1}
  #allocation0 [shape = 'u32[]', space=smem, size = 0x4, offset = 0x4, fixed_abs, tag = 'smem constant byte address 0x4 - core index']
  #allocation1 [shape = 'u32[72,128]{1,0:T(1,128)}', space=vmem, size = 0x9000, scoped, tag = 'internal scratch']
  %s0 = inlined_call_operand.vmem [shape: f32[25,128], index: 0, kind: input, shape index: {}]
  %s1 = inlined_call_operand.vmem [shape: f32[1,128], index: 1, kind: input, shape index: {}]
  %s2 = inlined_call_operand.vmem [shape: f32[2,26,32,128], index: 2, kind: input, shape index: {}]
  %s3 = inlined_call_operand.vmem [shape: f32[2,16,16,128], index: 3, kind: output, shape index: {}]
  %s4 = sld [smem:[#allocation0]]
  $region45: #{inception_dwconv2d.1} parent=0
    _
  %s6 = ssub.s32 1, %s4
  %s7 = scalar_select 0, %s6, %s4
  loop: start=0, step=1, limit=6
  $region2: #{inception_dwconv2d.1} parent=0 // loop_pre_header
    _
  $region3: #{inception_dwconv2d.1} parent=0 // loop_header
    %s9 = sphi 0, %s13
    %p10 = scmp.ge.s32.totalorder %s9, 6
    %s16 = sphi 0, %s42
    %s17 = sphi 0, %s38
    %s18 = sphi 0, %s34
    %s19 = sphi 0, %s30
    %s20 = sphi 0, %s16
    %s21 = sphi 0, %s17
    %s22 = sphi 0, %s18
    %s23 = sphi 0, %s19
    %s24 = sphi 0, %s20
    %s25 = sphi 0, %s21
    %s26 = sphi 0, %s22
    %s27 = sphi 0, %s23
    %s45 = sphi 0, %s47
    %s48 = sphi 0, %s45
    %s49 = sphi 0, %s48
    %s65 = sphi 0, %s49
    %s71 = sphi 0, %s73
    %s74 = sphi 0, %s71
    %s75 = sphi 0, %s74
    %s91 = sphi 0, %s75
    %s99 = sphi 0, %s101
    %s102 = sphi 0, %s99
    %s103 = sphi 0, %s102
    %s119 = sphi 0, %s103
    %s131 = sphi 0, %s133
    %s134 = sphi 0, %s131
    %s135 = sphi 0, %s134
    %s151 = sphi 0, %s135
  $region4: #{inception_dwconv2d.1} parent=0 // loop_header_branch
    %12 = sbr.rel (%p10) target = $region8
  $region5: #{inception_dwconv2d.1} parent=0 // loop_body
    %s14 = ssub.s32 %s9, 1
    %s15 = ssub.s32 %s9, 2
    %s28 = sadd.s32 1, %s19
    %p29 = scmp.ge.s32.totalorder %s28, 1
    %s30 = scalar_select %p29, 0, %s28
    %s31 = sadd.s32 1, %s18
    %s32 = scalar_select %p29, %s31, %s18
    %p33 = scmp.ge.s32.totalorder %s32, 2
    %s34 = scalar_select %p33, 0, %s32
    %s35 = sadd.s32 1, %s17
    %s36 = scalar_select %p33, %s35, %s17
    %p37 = scmp.ge.s32.totalorder %s36, 1
    %s38 = scalar_select %p37, 0, %s36
    %s39 = sadd.s32 1, %s16
    %s40 = scalar_select %p37, %s39, %s16
    %p41 = scmp.ge.s32.totalorder %s40, 2
    %s42 = scalar_select %p41, 0, %s40
    %s43 = ssub.s32 %s17, %s38
    %p44 = scmp.eq.s32.totalorder %s43, 0
    %s46 = sadd.s32 %s45, 1
    %s47 = scalar_select %p44, %s45, %s46
    %p50 = pneg %p44
    %p51 = scmp.eq.s32.totalorder %s9, 3
    %p52 = por %p50, %p51
    %p53 = scmp.ne.s32.totalorder %s45, %s48
    %p54 = scmp.eq.s32.totalorder %s9, 0
    %p55 = por %p53, %p54
    %p56 = scmp.ne.s32.totalorder %s45, %s48
    %p57 = scmp.eq.s32.totalorder %s14, 3
    %p58 = por %p56, %p57
    %p59 = scmp.ne.s32.totalorder %s48, %s49
    %p60 = scmp.eq.s32.totalorder %s14, 0
    %p61 = por %p59, %p60
    %p62 = scmp.ne.s32.totalorder %s48, %s49
    %p63 = scmp.eq.s32.totalorder %s15, 3
    %p64 = por %p62, %p63
    %p66 = scmp.ne.s32.totalorder %s49, %s65
    %p67 = scmp.eq.s32.totalorder %s15, 0
    %p68 = por %p66, %p67
    %s69 = ssub.s32 %s17, %s38
    %p70 = scmp.eq.s32.totalorder %s69, 0
    %s72 = sadd.s32 %s71, 1
    %s73 = scalar_select %p70, %s71, %s72
    %p76 = pneg %p70
    %p77 = scmp.eq.s32.totalorder %s9, 3
    %p78 = por %p76, %p77
    %p79 = scmp.ne.s32.totalorder %s71, %s74
    %p80 = scmp.eq.s32.totalorder %s9, 0
    %p81 = por %p79, %p80
    %p82 = scmp.ne.s32.totalorder %s71, %s74
    %p83 = scmp.eq.s32.totalorder %s14, 3
    %p84 = por %p82, %p83
    %p85 = scmp.ne.s32.totalorder %s74, %s75
    %p86 = scmp.eq.s32.totalorder %s14, 0
    %p87 = por %p85, %p86
    %p88 = scmp.ne.s32.totalorder %s74, %s75
    %p89 = scmp.eq.s32.totalorder %s15, 3
    %p90 = por %p88, %p89
    %p92 = scmp.ne.s32.totalorder %s75, %s91
    %p93 = scmp.eq.s32.totalorder %s15, 0
    %p94 = por %p92, %p93
    %s95 = ssub.s32 %s16, %s42
    %s96 = ssub.s32 %s17, %s38
    %s97 = sor.u32 %s95, %s96
    %p98 = scmp.eq.s32.totalorder %s97, 0
    %s100 = sadd.s32 %s99, 1
    %s101 = scalar_select %p98, %s99, %s100
    %p104 = pneg %p98
    %p105 = scmp.eq.s32.totalorder %s9, 3
    %p106 = por %p104, %p105
    %p107 = scmp.ne.s32.totalorder %s99, %s102
    %p108 = scmp.eq.s32.totalorder %s9, 0
    %p109 = por %p107, %p108
    %p110 = scmp.ne.s32.totalorder %s99, %s102
    %p111 = scmp.eq.s32.totalorder %s14, 3
    %p112 = por %p110, %p111
    %p113 = scmp.ne.s32.totalorder %s102, %s103
    %p114 = scmp.eq.s32.totalorder %s14, 0
    %p115 = por %p113, %p114
    %p116 = scmp.ne.s32.totalorder %s102, %s103
    %p117 = scmp.eq.s32.totalorder %s15, 3
    %p118 = por %p116, %p117
    %p120 = scmp.ne.s32.totalorder %s103, %s119
    %p121 = scmp.eq.s32.totalorder %s15, 0
    %p122 = por %p120, %p121
    %s123 = ssub.s32 %s16, %s42
    %s124 = ssub.s32 %s18, %s34
    %s125 = sor.u32 %s123, %s124
    %s126 = ssub.s32 %s19, %s30
    %s127 = sor.u32 %s125, %s126
    %s128 = ssub.s32 %s17, %s38
    %s129 = sor.u32 %s127, %s128
    %p130 = scmp.eq.s32.totalorder %s129, 0
    %s132 = sadd.s32 %s131, 1
    %s133 = scalar_select %p130, %s131, %s132
    %p136 = pneg %p130
    %p137 = scmp.eq.s32.totalorder %s9, 3
    %p138 = por %p136, %p137
    %p139 = scmp.ne.s32.totalorder %s131, %s134
    %p140 = scmp.eq.s32.totalorder %s9, 0
    %p141 = por %p139, %p140
    %p142 = scmp.ne.s32.totalorder %s131, %s134
    %p143 = scmp.eq.s32.totalorder %s14, 3
    %p144 = por %p142, %p143
    %p145 = scmp.ne.s32.totalorder %s134, %s135
    %p146 = scmp.eq.s32.totalorder %s14, 0
    %p147 = por %p145, %p146
    %p148 = scmp.ne.s32.totalorder %s134, %s135
    %p149 = scmp.eq.s32.totalorder %s15, 3
    %p150 = por %p148, %p149
    %p152 = scmp.ne.s32.totalorder %s135, %s151
    %p153 = scmp.eq.s32.totalorder %s15, 0
    %p154 = por %p152, %p153
    %p155 = scmp.le.s32.totalorder 1, %s9
    %p156 = scmp.lt.s32.totalorder %s9, 5
    %p157 = pnand %p155, %p156
    %p158 = pneg %p157
    // Predicated region
    $region9: #{inception_dwconv2d.1} parent=5 // pred_check
      _
    $region10: #{inception_dwconv2d.1} parent=5 // pred_check_branch
      %160 = sbr.rel (%p157) target = $region12
    $region11: #{inception_dwconv2d.1} parent=5 // pred_region
      %s161 = ssub.s32 %s9, 1
      // Predicated region
      $region13: #{inception_dwconv2d.1} parent=11 // pred_check
        %p162 = pneg %p61
      $region14: #{inception_dwconv2d.1} parent=11 // pred_check_branch
        %164 = sbr.rel (%p162) target = $region16
      $region15: #{inception_dwconv2d.1} parent=11 // pred_region
        %p165 = scmp.lt.s32.totalorder %s21, 0
        %s166 = scalar_select %p165, %s21, 0
        %s167 = smul.addr %s166, 8
        %s168 = scalar_lea.vmem %s0, %s167
      $region16: #{inception_dwconv2d.1} parent=11 // pred_fallthru
        _
      // Predicated region
      $region17: #{inception_dwconv2d.1} parent=11 // pred_check
        %p169 = pneg %p87
      $region18: #{inception_dwconv2d.1} parent=11 // pred_check_branch
        %171 = sbr.rel (%p169) target = $region20
      $region19: #{inception_dwconv2d.1} parent=11 // pred_region
        %p172 = scmp.lt.s32.totalorder %s21, 0
        %s173 = scalar_select %p172, %s21, 0
        %s174 = scalar_lea.vmem %s1, %s173
      $region20: #{inception_dwconv2d.1} parent=11 // pred_fallthru
        _
    $region12: #{inception_dwconv2d.1} parent=5 // pred_fallthru
      _
    %p175 = scmp.lt.s32.totalorder %s9, 4
    // Predicated region
    $region21: #{inception_dwconv2d.1} parent=5 // pred_check
      %p176 = pneg %p175
    $region22: #{inception_dwconv2d.1} parent=5 // pred_check_branch
      %178 = sbr.rel (%p176) target = $region24
    $region23: #{inception_dwconv2d.1} parent=5 // pred_region
      // Predicated region
      $region25: #{inception_dwconv2d.1} parent=23 // pred_check
        %p179 = pneg %p109
      $region26: #{inception_dwconv2d.1} parent=23 // pred_check_branch
        %181 = sbr.rel (%p179) target = $region28
      $region27: #{inception_dwconv2d.1} parent=23 // pred_region
        %p182 = scmp.lt.s32.totalorder %s16, 1
        %s183 = scalar_select %p182, %s16, 1
        %p184 = scmp.lt.s32.totalorder %s17, 0
        %s185 = scalar_select %p184, %s17, 0
        %s186 = smul.addr %s183, 104
        %s187 = sadd.s32 %s185, %s186
        %s188 = smul.addr %s187, 8
        %s189 = scalar_lea.vmem %s2, %s188
      $region28: #{inception_dwconv2d.1} parent=23 // pred_fallthru
        _
    $region24: #{inception_dwconv2d.1} parent=5 // pred_fallthru
      _
    %p190 = scmp.le.s32.totalorder 1, %s9
    %p191 = scmp.lt.s32.totalorder %s9, 5
    %p192 = pnand %p190, %p191
    %p193 = pneg %p192
    // Predicated region
    $region29: #{inception_dwconv2d.1} parent=5 // pred_check
      _
    $region30: #{inception_dwconv2d.1} parent=5 // pred_check_branch
      %195 = sbr.rel (%p192) target = $region32
    $region31: #{inception_dwconv2d.1} parent=5 // pred_region
      %s196 = ssub.s32 %s9, 1
      %p197 = scmp.lt.s32.totalorder %s21, 0
      %s198 = scalar_select %p197, %s21, 0
      %s199 = smul.addr %s198, 8
      %s200 = scalar_lea.vmem %s0, %s199
      %p201 = pneg %p61
      %p202 = pneg %p58
      %p203 = scmp.lt.s32.totalorder %s21, 0
      %s204 = scalar_select %p203, %s21, 0
      %s205 = scalar_lea.vmem %s1, %s204
      %p206 = pneg %p87
      %p207 = pneg %p84
      %p208 = scmp.lt.s32.totalorder %s20, 1
      %s209 = scalar_select %p208, %s20, 1
      %p210 = scmp.lt.s32.totalorder %s21, 0
      %s211 = scalar_select %p210, %s21, 0
      %s212 = smul.addr %s209, 104
      %s213 = sadd.s32 %s211, %s212
      %s214 = smul.addr %s213, 8
      %s215 = scalar_lea.vmem %s2, %s214
      %p216 = pneg %p115
      %p217 = pneg %p112
      %p218 = pneg %p147
      %p219 = pneg %p144
      %s220 = smul.u32 8, %s22
      %s221 = smul.u32 2, %s23
      %p222 = scmp.lt.s32.totalorder %s20, 1
      %s223 = scalar_select %p222, %s20, 1
      %p224 = scmp.lt.s32.totalorder %s220, 15
      %s225 = scalar_select %p224, %s220, 15
      %p226 = scmp.lt.s32.totalorder %s221, 1
      %s227 = scalar_select %p226, %s221, 1
      %p228 = scmp.lt.s32.totalorder %s21, 0
      %s229 = scalar_select %p228, %s21, 0
      %s230 = sadd.s32 %s229, %s227
      %s231 = smul.addr %s225, 2
      %s232 = sadd.s32 %s230, %s231
      %s233 = smul.addr %s223, 32
      %s234 = sadd.s32 %s232, %s233
      %s235 = smul.addr %s234, 8
      %s236 = scalar_lea.vmem %s3, %s235
      %p237 = scmp.lt.s32.totalorder %s21, 0
      %s238 = scalar_select %p237, %s21, 0
      %s239 = smul.addr %s238, 8
      %s240 = scalar_lea.vmem %s0, %s239
      %p241 = scmp.lt.s32.totalorder %s21, 0
      %s242 = scalar_select %p241, %s21, 0
      %s243 = scalar_lea.vmem %s1, %s242
      %p244 = scmp.lt.s32.totalorder %s20, 1
      %s245 = scalar_select %p244, %s20, 1
      %p246 = scmp.lt.s32.totalorder %s21, 0
      %s247 = scalar_select %p246, %s21, 0
      %s248 = smul.addr %s245, 104
      %s249 = sadd.s32 %s247, %s248
      %s250 = smul.addr %s249, 8
      %s251 = scalar_lea.vmem %s2, %s250
      %s252 = smul.u32 8, %s22
      %s253 = smul.u32 2, %s23
      %p254 = scmp.lt.s32.totalorder %s20, 1
      %s255 = scalar_select %p254, %s20, 1
      %p256 = scmp.lt.s32.totalorder %s252, 15
      %s257 = scalar_select %p256, %s252, 15
      %p258 = scmp.lt.s32.totalorder %s253, 1
      %s259 = scalar_select %p258, %s253, 1
      %p260 = scmp.lt.s32.totalorder %s21, 0
      %s261 = scalar_select %p260, %s21, 0
      %s262 = sadd.s32 %s261, %s259
      %s263 = smul.addr %s257, 2
      %s264 = sadd.s32 %s262, %s263
      %s265 = smul.addr %s255, 32
      %s266 = sadd.s32 %s264, %s265
      %s267 = smul.addr %s266, 8
      %s268 = scalar_lea.vmem %s3, %s267
      %s269 = smul.u32 8, %s22
      %s270 = smul.u32 2, %s23
      %s271 = smul.u32 %s22, 8
      %s272 = smul.u32 %s23, 16
      %v273 = vld [vmem:[%s243] sm:$0x1]
      %v275 = vperm.slane %v273, 0
      %s277 = sadd.s32 %s272, 8
      %s278 = smul.u32 %s271, 32
      %s279 = sadd.s32 %s277, %s278
      %s280 = scalar_lea.vmem %s251, %s279
      %v281 = vld [vmem:[%s280] sm:$0xff]
      %v282 = vld [vmem:[%s280 + $0x8] sm:$0xff]
      %v283 = vld [vmem:[%s280 + $0x20] sm:$0xff]
      %v284 = vld [vmem:[%s280 + $0x28] sm:$0xff]
      %v285 = vld [vmem:[%s280 + $0x40] sm:$0xff]
      %v286 = vld [vmem:[%s280 + $0x48] sm:$0xff]
      %v287 = vld [vmem:[%s280 + $0x60] sm:$0xff]
      %v288 = vld [vmem:[%s280 + $0x68] sm:$0xff]
      %v289 = vld [vmem:[%s280 + $0x80] sm:$0xff]
      %v290 = vld [vmem:[%s280 + $0x88] sm:$0xff]
      %v291 = vld [vmem:[%s280 + $0xa0] sm:$0xff]
      %v292 = vld [vmem:[%s280 + $0xa8] sm:$0xff]
      %v293 = vld [vmem:[%s280 + $0xc0] sm:$0xff]
      %v294 = vld [vmem:[%s280 + $0xc8] sm:$0xff]
      %v295 = vld [vmem:[%s280 + $0xe0] sm:$0xff]
      %v296 = vld [vmem:[%s280 + $0xe8] sm:$0xff]
      %v297 = vld [vmem:[%s240] sm:$0x1]
      %v298 = vperm.slane %v297, 0
      %v299 = vmul.f32 %v281, %v298
      %v300 = vmul.f32 %v282, %v298
      %v301 = vmul.f32 %v283, %v298
      %v302 = vmul.f32 %v284, %v298
      %v303 = vmul.f32 %v285, %v298
      %v304 = vmul.f32 %v286, %v298
      %v305 = vmul.f32 %v287, %v298
      %v306 = vmul.f32 %v288, %v298
      %v307 = vmul.f32 %v289, %v298
      %v308 = vmul.f32 %v290, %v298
      %v309 = vmul.f32 %v291, %v298
      %v310 = vmul.f32 %v292, %v298
      %v311 = vmul.f32 %v293, %v298
      %v312 = vmul.f32 %v294, %v298
      %v313 = vmul.f32 %v295, %v298
      %v314 = vmul.f32 %v296, %v298
      %v315 = vadd.f32 %v275, %v299
      %v316 = vadd.f32 %v275, %v300
      %v317 = vadd.f32 %v275, %v301
      %v318 = vadd.f32 %v275, %v302
      %v319 = vadd.f32 %v275, %v303
      %v320 = vadd.f32 %v275, %v304
      %v321 = vadd.f32 %v275, %v305
      %v322 = vadd.f32 %v275, %v306
      %v323 = vadd.f32 %v275, %v307
      %v324 = vadd.f32 %v275, %v308
      %v325 = vadd.f32 %v275, %v309
      %v326 = vadd.f32 %v275, %v310
      %v327 = vadd.f32 %v275, %v311
      %v328 = vadd.f32 %v275, %v312
      %v329 = vadd.f32 %v275, %v313
      %v330 = vadd.f32 %v275, %v314
      %s331 = sadd.s32 %s271, 1
      %s332 = smul.u32 %s331, 32
      %s333 = sadd.s32 %s277, %s332
      %s334 = scalar_lea.vmem %s251, %s333
      %v335 = vld [vmem:[%s334] sm:$0xff]
      %v336 = vld [vmem:[%s334 + $0x8] sm:$0xff]
      %v337 = vld [vmem:[%s334 + $0x20] sm:$0xff]
      %v338 = vld [vmem:[%s334 + $0x28] sm:$0xff]
      %v339 = vld [vmem:[%s334 + $0x40] sm:$0xff]
      %v340 = vld [vmem:[%s334 + $0x48] sm:$0xff]
      %v341 = vld [vmem:[%s334 + $0x60] sm:$0xff]
      %v342 = vld [vmem:[%s334 + $0x68] sm:$0xff]
      %v343 = vld [vmem:[%s334 + $0x80] sm:$0xff]
      %v344 = vld [vmem:[%s334 + $0x88] sm:$0xff]
      %v345 = vld [vmem:[%s334 + $0xa0] sm:$0xff]
      %v346 = vld [vmem:[%s334 + $0xa8] sm:$0xff]
      %v347 = vld [vmem:[%s334 + $0xc0] sm:$0xff]
      %v348 = vld [vmem:[%s334 + $0xc8] sm:$0xff]
      %v349 = vld [vmem:[%s334 + $0xe0] sm:$0xff]
      %v350 = vld [vmem:[%s334 + $0xe8] sm:$0xff]
      %v351 = vld [vmem:[%s240 + $0x1] sm:$0x1]
      %v352 = vperm.slane %v351, 0
      %v353 = vmul.f32 %v335, %v352
      %v354 = vmul.f32 %v336, %v352
      %v355 = vmul.f32 %v337, %v352
      %v356 = vmul.f32 %v338, %v352
      %v357 = vmul.f32 %v339, %v352
      %v358 = vmul.f32 %v340, %v352
      %v359 = vmul.f32 %v341, %v352
      %v360 = vmul.f32 %v342, %v352
      %v361 = vmul.f32 %v343, %v352
      %v362 = vmul.f32 %v344, %v352
      %v363 = vmul.f32 %v345, %v352
      %v364 = vmul.f32 %v346, %v352
      %v365 = vmul.f32 %v347, %v352
      %v366 = vmul.f32 %v348, %v352
      %v367 = vmul.f32 %v349, %v352
      %v368 = vmul.f32 %v350, %v352
      %v369 = vadd.f32 %v315, %v353
      %v370 = vadd.f32 %v316, %v354
      %v371 = vadd.f32 %v317, %v355
      %v372 = vadd.f32 %v318, %v356
      %v373 = vadd.f32 %v319, %v357
      %v374 = vadd.f32 %v320, %v358
      %v375 = vadd.f32 %v321, %v359
      %v376 = vadd.f32 %v322, %v360
      %v377 = vadd.f32 %v323, %v361
      %v378 = vadd.f32 %v324, %v362
      %v379 = vadd.f32 %v325, %v363
      %v380 = vadd.f32 %v326, %v364
      %v381 = vadd.f32 %v327, %v365
      %v382 = vadd.f32 %v328, %v366
      %v383 = vadd.f32 %v329, %v367
      %v384 = vadd.f32 %v330, %v368
      %s385 = sadd.s32 %s271, 2
      %s386 = smul.u32 %s385, 32
      %s387 = sadd.s32 %s277, %s386
      %s388 = scalar_lea.vmem %s251, %s387
      %v389 = vld [vmem:[%s388] sm:$0xff]
      %v390 = vld [vmem:[%s388 + $0x8] sm:$0xff]
      %v391 = vld [vmem:[%s388 + $0x20] sm:$0xff]
      %v392 = vld [vmem:[%s388 + $0x28] sm:$0xff]
      %v393 = vld [vmem:[%s388 + $0x40] sm:$0xff]
      %v394 = vld [vmem:[%s388 + $0x48] sm:$0xff]
      %v395 = vld [vmem:[%s388 + $0x60] sm:$0xff]
      %v396 = vld [vmem:[%s388 + $0x68] sm:$0xff]
      %v397 = vld [vmem:[%s388 + $0x80] sm:$0xff]
      %v398 = vld [vmem:[%s388 + $0x88] sm:$0xff]
      %v399 = vld [vmem:[%s388 + $0xa0] sm:$0xff]
      %v400 = vld [vmem:[%s388 + $0xa8] sm:$0xff]
      %v401 = vld [vmem:[%s388 + $0xc0] sm:$0xff]
      %v402 = vld [vmem:[%s388 + $0xc8] sm:$0xff]
      %v403 = vld [vmem:[%s388 + $0xe0] sm:$0xff]
      %v404 = vld [vmem:[%s388 + $0xe8] sm:$0xff]
      %v405 = vld [vmem:[%s240 + $0x2] sm:$0x1]
      %v406 = vperm.slane %v405, 0
      %v407 = vmul.f32 %v389, %v406
      %v408 = vmul.f32 %v390, %v406
      %v409 = vmul.f32 %v391, %v406
      %v410 = vmul.f32 %v392, %v406
      %v411 = vmul.f32 %v393, %v406
      %v412 = vmul.f32 %v394, %v406
      %v413 = vmul.f32 %v395, %v406
      %v414 = vmul.f32 %v396, %v406
      %v415 = vmul.f32 %v397, %v406
      %v416 = vmul.f32 %v398, %v406
      %v417 = vmul.f32 %v399, %v406
      %v418 = vmul.f32 %v400, %v406
      %v419 = vmul.f32 %v401, %v406
      %v420 = vmul.f32 %v402, %v406
      %v421 = vmul.f32 %v403, %v406
      %v422 = vmul.f32 %v404, %v406
      %v423 = vadd.f32 %v369, %v407
      %v424 = vadd.f32 %v370, %v408
      %v425 = vadd.f32 %v371, %v409
      %v426 = vadd.f32 %v372, %v410
      %v427 = vadd.f32 %v373, %v411
      %v428 = vadd.f32 %v374, %v412
      %v429 = vadd.f32 %v375, %v413
      %v430 = vadd.f32 %v376, %v414
      %v431 = vadd.f32 %v377, %v415
      %v432 = vadd.f32 %v378, %v416
      %v433 = vadd.f32 %v379, %v417
      %v434 = vadd.f32 %v380, %v418
      %v435 = vadd.f32 %v381, %v419
      %v436 = vadd.f32 %v382, %v420
      %v437 = vadd.f32 %v383, %v421
      %v438 = vadd.f32 %v384, %v422
      %s439 = sadd.s32 %s271, 3
      %s440 = smul.u32 %s439, 32
      %s441 = sadd.s32 %s277, %s440
      %s442 = scalar_lea.vmem %s251, %s441
      %v443 = vld [vmem:[%s442] sm:$0xff]
      %v444 = vld [vmem:[%s442 + $0x8] sm:$0xff]
      %v445 = vld [vmem:[%s442 + $0x20] sm:$0xff]
      %v446 = vld [vmem:[%s442 + $0x28] sm:$0xff]
      %v447 = vld [vmem:[%s442 + $0x40] sm:$0xff]
      %v448 = vld [vmem:[%s442 + $0x48] sm:$0xff]
      %v449 = vld [vmem:[%s442 + $0x60] sm:$0xff]
      %v450 = vld [vmem:[%s442 + $0x68] sm:$0xff]
      %v451 = vld [vmem:[%s442 + $0x80] sm:$0xff]
      %v452 = vld [vmem:[%s442 + $0x88] sm:$0xff]
      %v453 = vld [vmem:[%s442 + $0xa0] sm:$0xff]
      %v454 = vld [vmem:[%s442 + $0xa8] sm:$0xff]
      %v455 = vld [vmem:[%s442 + $0xc0] sm:$0xff]
      %v456 = vld [vmem:[%s442 + $0xc8] sm:$0xff]
      %v457 = vld [vmem:[%s442 + $0xe0] sm:$0xff]
      %v458 = vld [vmem:[%s442 + $0xe8] sm:$0xff]
      %v459 = vld [vmem:[%s240 + $0x3] sm:$0x1]
      %v460 = vperm.slane %v459, 0
      %v461 = vmul.f32 %v443, %v460
      %v462 = vmul.f32 %v444, %v460
      %v463 = vmul.f32 %v445, %v460
      %v464 = vmul.f32 %v446, %v460
      %v465 = vmul.f32 %v447, %v460
      %v466 = vmul.f32 %v448, %v460
      %v467 = vmul.f32 %v449, %v460
      %v468 = vmul.f32 %v450, %v460
      %v469 = vmul.f32 %v451, %v460
      %v470 = vmul.f32 %v452, %v460
      %v471 = vmul.f32 %v453, %v460
      %v472 = vmul.f32 %v454, %v460
      %v473 = vmul.f32 %v455, %v460
      %v474 = vmul.f32 %v456, %v460
      %v475 = vmul.f32 %v457, %v460
      %v476 = vmul.f32 %v458, %v460
      %v477 = vadd.f32 %v423, %v461
      %v478 = vadd.f32 %v424, %v462
      %v479 = vadd.f32 %v425, %v463
      %v480 = vadd.f32 %v426, %v464
      %v481 = vadd.f32 %v427, %v465
      %v482 = vadd.f32 %v428, %v466
      %v483 = vadd.f32 %v429, %v467
      %v484 = vadd.f32 %v430, %v468
      %v485 = vadd.f32 %v431, %v469
      %v486 = vadd.f32 %v432, %v470
      %v487 = vadd.f32 %v433, %v471
      %v488 = vadd.f32 %v434, %v472
      %v489 = vadd.f32 %v435, %v473
      %v490 = vadd.f32 %v436, %v474
      %v491 = vadd.f32 %v437, %v475
      %v492 = vadd.f32 %v438, %v476
      %s493 = sadd.s32 %s271, 4
      %s494 = smul.u32 %s493, 32
      %s495 = sadd.s32 %s272, %s494
      %s496 = scalar_lea.vmem %s251, %s495
      %v497 = vld [vmem:[%s496] sm:$0xff]
      %v498 = vld [vmem:[%s496 + $0x8] sm:$0xff]
      %v499 = vld [vmem:[%s496 + $0x10] sm:$0xff]
      %v500 = vld [vmem:[%s496 + $0x18] sm:$0x1]
      %v501 = vld [vmem:[%s496 + $0x20] sm:$0xff]
      %v502 = vld [vmem:[%s496 + $0x28] sm:$0xff]
      %v503 = vld [vmem:[%s496 + $0x30] sm:$0xff]
      %v504 = vld [vmem:[%s496 + $0x38] sm:$0x1]
      %v505 = vld [vmem:[%s496 + $0x40] sm:$0xff]
      %v506 = vld [vmem:[%s496 + $0x48] sm:$0xff]
      %v507 = vld [vmem:[%s496 + $0x50] sm:$0xff]
      %v508 = vld [vmem:[%s496 + $0x58] sm:$0x1]
      %v509 = vld [vmem:[%s496 + $0x60] sm:$0xff]
      %v510 = vld [vmem:[%s496 + $0x68] sm:$0xff]
      %v511 = vld [vmem:[%s496 + $0x70] sm:$0xff]
      %v512 = vld [vmem:[%s496 + $0x78] sm:$0x1]
      %v513 = vld [vmem:[%s496 + $0x80] sm:$0xff]
      %v514 = vld [vmem:[%s496 + $0x88] sm:$0xff]
      %v515 = vld [vmem:[%s496 + $0x90] sm:$0xff]
      %v516 = vld [vmem:[%s496 + $0x98] sm:$0x1]
      %v517 = vld [vmem:[%s496 + $0xa0] sm:$0xff]
      %v518 = vld [vmem:[%s496 + $0xa8] sm:$0xff]
      %v519 = vld [vmem:[%s496 + $0xb0] sm:$0xff]
      %v520 = vld [vmem:[%s496 + $0xb8] sm:$0x1]
      %v521 = vld [vmem:[%s496 + $0xc0] sm:$0xff]
      %v522 = vld [vmem:[%s496 + $0xc8] sm:$0xff]
      %v523 = vld [vmem:[%s496 + $0xd0] sm:$0xff]
      %v524 = vld [vmem:[%s496 + $0xd8] sm:$0x1]
      %v525 = vld [vmem:[%s496 + $0xe0] sm:$0xff]
      %v526 = vld [vmem:[%s496 + $0xe8] sm:$0xff]
      %v527 = vld [vmem:[%s496 + $0xf0] sm:$0xff]
      %v528 = vld [vmem:[%s496 + $0xf8] sm:$0x1]
      %v529 = vld [vmem:[%s240 + $0x4] sm:$0x1]
      %v530 = vperm.slane %v529, 0
      %v531 = vmul.f32 %v497, %v530
      %v532 = vmul.f32 %v498, %v530
      %v533 = vmul.f32 %v499, %v530
      %v534 = vmul.f32 %v501, %v530
      %v535 = vmul.f32 %v502, %v530
      %v536 = vmul.f32 %v503, %v530
      %v537 = vmul.f32 %v505, %v530
      %v538 = vmul.f32 %v506, %v530
      %v539 = vmul.f32 %v507, %v530
      %v540 = vmul.f32 %v509, %v530
      %v541 = vmul.f32 %v510, %v530
      %v542 = vmul.f32 %v511, %v530
      %v543 = vmul.f32 %v513, %v530
      %v544 = vmul.f32 %v514, %v530
      %v545 = vmul.f32 %v515, %v530
      %v546 = vmul.f32 %v517, %v530
      %v547 = vmul.f32 %v518, %v530
      %v548 = vmul.f32 %v519, %v530
      %v549 = vmul.f32 %v521, %v530
      %v550 = vmul.f32 %v522, %v530
      %v551 = vmul.f32 %v523, %v530
      %v552 = vmul.f32 %v525, %v530
      %v553 = vmul.f32 %v526, %v530
      %v554 = vmul.f32 %v527, %v530
      %vm579 = vcmask 1040384
      %v580 = vrot.slane %v531, 7
      %v581 = vrot.slane %v532, 7
      %v582 = vsel %vm579, %v580, %v581
      %v583 = vrot.slane %v533, 7
      %v584 = vsel %vm579, %v581, %v583
      %v585 = vrot.slane %v534, 7
      %v586 = vrot.slane %v535, 7
      %v587 = vsel %vm579, %v585, %v586
      %v588 = vrot.slane %v536, 7
      %v589 = vsel %vm579, %v586, %v588
      %v590 = vrot.slane %v537, 7
      %v591 = vrot.slane %v538, 7
      %v592 = vsel %vm579, %v590, %v591
      %v593 = vrot.slane %v539, 7
      %v594 = vsel %vm579, %v591, %v593
      %v595 = vrot.slane %v540, 7
      %v596 = vrot.slane %v541, 7
      %v597 = vsel %vm579, %v595, %v596
      %v598 = vrot.slane %v542, 7
      %v599 = vsel %vm579, %v596, %v598
      %v600 = vrot.slane %v543, 7
      %v601 = vrot.slane %v544, 7
      %v602 = vsel %vm579, %v600, %v601
      %v603 = vrot.slane %v545, 7
      %v604 = vsel %vm579, %v601, %v603
      %v605 = vrot.slane %v546, 7
      %v606 = vrot.slane %v547, 7
      %v607 = vsel %vm579, %v605, %v606
      %v608 = vrot.slane %v548, 7
      %v609 = vsel %vm579, %v606, %v608
      %v610 = vrot.slane %v549, 7
      %v611 = vrot.slane %v550, 7
      %v612 = vsel %vm579, %v610, %v611
      %v613 = vrot.slane %v551, 7
      %v614 = vsel %vm579, %v611, %v613
      %v615 = vrot.slane %v552, 7
      %v616 = vrot.slane %v553, 7
      %v617 = vsel %vm579, %v615, %v616
      %v618 = vrot.slane %v554, 7
      %v619 = vsel %vm579, %v616, %v618
      %v636 = vadd.f32 %v477, %v582
      %v637 = vadd.f32 %v478, %v584
      %v638 = vadd.f32 %v479, %v587
      %v639 = vadd.f32 %v480, %v589
      %v640 = vadd.f32 %v481, %v592
      %v641 = vadd.f32 %v482, %v594
      %v642 = vadd.f32 %v483, %v597
      %v643 = vadd.f32 %v484, %v599
      %v644 = vadd.f32 %v485, %v602
      %v645 = vadd.f32 %v486, %v604
      %v646 = vadd.f32 %v487, %v607
      %v647 = vadd.f32 %v488, %v609
      %v648 = vadd.f32 %v489, %v612
      %v649 = vadd.f32 %v490, %v614
      %v650 = vadd.f32 %v491, %v617
      %v651 = vadd.f32 %v492, %v619
      %v652 = vld [vmem:[%s240 + $0x5] sm:$0x1]
      %v653 = vperm.slane %v652, 0
      %v654 = vmul.f32 %v498, %v653
      %v655 = vmul.f32 %v499, %v653
      %v656 = vmul.f32 %v502, %v653
      %v657 = vmul.f32 %v503, %v653
      %v658 = vmul.f32 %v506, %v653
      %v659 = vmul.f32 %v507, %v653
      %v660 = vmul.f32 %v510, %v653
      %v661 = vmul.f32 %v511, %v653
      %v662 = vmul.f32 %v514, %v653
      %v663 = vmul.f32 %v515, %v653
      %v664 = vmul.f32 %v518, %v653
      %v665 = vmul.f32 %v519, %v653
      %v666 = vmul.f32 %v522, %v653
      %v667 = vmul.f32 %v523, %v653
      %v668 = vmul.f32 %v526, %v653
      %v669 = vmul.f32 %v527, %v653
      %v670 = vadd.f32 %v636, %v654
      %v671 = vadd.f32 %v637, %v655
      %v672 = vadd.f32 %v638, %v656
      %v673 = vadd.f32 %v639, %v657
      %v674 = vadd.f32 %v640, %v658
      %v675 = vadd.f32 %v641, %v659
      %v676 = vadd.f32 %v642, %v660
      %v677 = vadd.f32 %v643, %v661
      %v678 = vadd.f32 %v644, %v662
      %v679 = vadd.f32 %v645, %v663
      %v680 = vadd.f32 %v646, %v664
      %v681 = vadd.f32 %v647, %v665
      %v682 = vadd.f32 %v648, %v666
      %v683 = vadd.f32 %v649, %v667
      %v684 = vadd.f32 %v650, %v668
      %v685 = vadd.f32 %v651, %v669
      %v686 = vld [vmem:[%s240 + $0x6] sm:$0x1]
      %v687 = vperm.slane %v686, 0
      %v688 = vmul.f32 %v498, %v687
      %v689 = vmul.f32 %v499, %v687
      %v690 = vmul.f32 %v500, %v687
      %v691 = vmul.f32 %v502, %v687
      %v692 = vmul.f32 %v503, %v687
      %v693 = vmul.f32 %v504, %v687
      %v694 = vmul.f32 %v506, %v687
      %v695 = vmul.f32 %v507, %v687
      %v696 = vmul.f32 %v508, %v687
      %v697 = vmul.f32 %v510, %v687
      %v698 = vmul.f32 %v511, %v687
      %v699 = vmul.f32 %v512, %v687
      %v700 = vmul.f32 %v514, %v687
      %v701 = vmul.f32 %v515, %v687
      %v702 = vmul.f32 %v516, %v687
      %v703 = vmul.f32 %v518, %v687
      %v704 = vmul.f32 %v519, %v687
      %v705 = vmul.f32 %v520, %v687
      %v706 = vmul.f32 %v522, %v687
      %v707 = vmul.f32 %v523, %v687
      %v708 = vmul.f32 %v524, %v687
      %v709 = vmul.f32 %v526, %v687
      %v710 = vmul.f32 %v527, %v687
      %v711 = vmul.f32 %v528, %v687
      %vm736 = vcmask 1046528
      %v737 = vrot.slane %v688, 1
      %v738 = vrot.slane %v689, 1
      %v739 = vsel %vm736, %v737, %v738
      %v740 = vrot.slane %v690, 1
      %v741 = vsel %vm736, %v738, %v740
      %v742 = vrot.slane %v691, 1
      %v743 = vrot.slane %v692, 1
      %v744 = vsel %vm736, %v742, %v743
      %v745 = vrot.slane %v693, 1
      %v746 = vsel %vm736, %v743, %v745
      %v747 = vrot.slane %v694, 1
      %v748 = vrot.slane %v695, 1
      %v749 = vsel %vm736, %v747, %v748
      %v750 = vrot.slane %v696, 1
      %v751 = vsel %vm736, %v748, %v750
      %v752 = vrot.slane %v697, 1
      %v753 = vrot.slane %v698, 1
      %v754 = vsel %vm736, %v752, %v753
      %v755 = vrot.slane %v699, 1
      %v756 = vsel %vm736, %v753, %v755
      %v757 = vrot.slane %v700, 1
      %v758 = vrot.slane %v701, 1
      %v759 = vsel %vm736, %v757, %v758
      %v760 = vrot.slane %v702, 1
      %v761 = vsel %vm736, %v758, %v760
      %v762 = vrot.slane %v703, 1
      %v763 = vrot.slane %v704, 1
      %v764 = vsel %vm736, %v762, %v763
      %v765 = vrot.slane %v705, 1
      %v766 = vsel %vm736, %v763, %v765
      %v767 = vrot.slane %v706, 1
      %v768 = vrot.slane %v707, 1
      %v769 = vsel %vm736, %v767, %v768
      %v770 = vrot.slane %v708, 1
      %v771 = vsel %vm736, %v768, %v770
      %v772 = vrot.slane %v709, 1
      %v773 = vrot.slane %v710, 1
      %v774 = vsel %vm736, %v772, %v773
      %v775 = vrot.slane %v711, 1
      %v776 = vsel %vm736, %v773, %v775
      %v793 = vadd.f32 %v670, %v739
      %v794 = vadd.f32 %v671, %v741
      %v795 = vadd.f32 %v672, %v744
      %v796 = vadd.f32 %v673, %v746
      %v797 = vadd.f32 %v674, %v749
      %v798 = vadd.f32 %v675, %v751
      %v799 = vadd.f32 %v676, %v754
      %v800 = vadd.f32 %v677, %v756
      %v801 = vadd.f32 %v678, %v759
      %v802 = vadd.f32 %v679, %v761
      %v803 = vadd.f32 %v680, %v764
      %v804 = vadd.f32 %v681, %v766
      %v805 = vadd.f32 %v682, %v769
      %v806 = vadd.f32 %v683, %v771
      %v807 = vadd.f32 %v684, %v774
      %v808 = vadd.f32 %v685, %v776
      %s809 = sadd.s32 %s271, 5
      %s810 = smul.u32 %s809, 32
      %s811 = sadd.s32 %s272, %s810
      %s812 = scalar_lea.vmem %s251, %s811
      %v813 = vld [vmem:[%s812] sm:$0xff]
      %v814 = vld [vmem:[%s812 + $0x8] sm:$0xff]
      %v815 = vld [vmem:[%s812 + $0x10] sm:$0xff]
      %v816 = vld [vmem:[%s812 + $0x18] sm:$0x1f]
      %v817 = vld [vmem:[%s812 + $0x20] sm:$0xff]
      %v818 = vld [vmem:[%s812 + $0x28] sm:$0xff]
      %v819 = vld [vmem:[%s812 + $0x30] sm:$0xff]
      %v820 = vld [vmem:[%s812 + $0x38] sm:$0x1f]
      %v821 = vld [vmem:[%s812 + $0x40] sm:$0xff]
      %v822 = vld [vmem:[%s812 + $0x48] sm:$0xff]
      %v823 = vld [vmem:[%s812 + $0x50] sm:$0xff]
      %v824 = vld [vmem:[%s812 + $0x58] sm:$0x1f]
      %v825 = vld [vmem:[%s812 + $0x60] sm:$0xff]
      %v826 = vld [vmem:[%s812 + $0x68] sm:$0xff]
      %v827 = vld [vmem:[%s812 + $0x70] sm:$0xff]
      %v828 = vld [vmem:[%s812 + $0x78] sm:$0x1f]
      %v829 = vld [vmem:[%s812 + $0x80] sm:$0xff]
      %v830 = vld [vmem:[%s812 + $0x88] sm:$0xff]
      %v831 = vld [vmem:[%s812 + $0x90] sm:$0xff]
      %v832 = vld [vmem:[%s812 + $0x98] sm:$0x1f]
      %v833 = vld [vmem:[%s812 + $0xa0] sm:$0xff]
      %v834 = vld [vmem:[%s812 + $0xa8] sm:$0xff]
      %v835 = vld [vmem:[%s812 + $0xb0] sm:$0xff]
      %v836 = vld [vmem:[%s812 + $0xb8] sm:$0x1f]
      %v837 = vld [vmem:[%s812 + $0xc0] sm:$0xff]
      %v838 = vld [vmem:[%s812 + $0xc8] sm:$0xff]
      %v839 = vld [vmem:[%s812 + $0xd0] sm:$0xff]
      %v840 = vld [vmem:[%s812 + $0xd8] sm:$0x1f]
      %v841 = vld [vmem:[%s812 + $0xe0] sm:$0xff]
      %v842 = vld [vmem:[%s812 + $0xe8] sm:$0xff]
      %v843 = vld [vmem:[%s812 + $0xf0] sm:$0xff]
      %v844 = vld [vmem:[%s812 + $0xf8] sm:$0x1f]
      %v845 = vld [vmem:[%s240 + $0x7] sm:$0x1]
      %v846 = vperm.slane %v845, 0
      %v847 = vmul.f32 %v813, %v846
      %v848 = vmul.f32 %v814, %v846
      %v849 = vmul.f32 %v815, %v846
      %v850 = vmul.f32 %v817, %v846
      %v851 = vmul.f32 %v818, %v846
      %v852 = vmul.f32 %v819, %v846
      %v853 = vmul.f32 %v821, %v846
      %v854 = vmul.f32 %v822, %v846
      %v855 = vmul.f32 %v823, %v846
      %v856 = vmul.f32 %v825, %v846
      %v857 = vmul.f32 %v826, %v846
      %v858 = vmul.f32 %v827, %v846
      %v859 = vmul.f32 %v829, %v846
      %v860 = vmul.f32 %v830, %v846
      %v861 = vmul.f32 %v831, %v846
      %v862 = vmul.f32 %v833, %v846
      %v863 = vmul.f32 %v834, %v846
      %v864 = vmul.f32 %v835, %v846
      %v865 = vmul.f32 %v837, %v846
      %v866 = vmul.f32 %v838, %v846
      %v867 = vmul.f32 %v839, %v846
      %v868 = vmul.f32 %v841, %v846
      %v869 = vmul.f32 %v842, %v846
      %v870 = vmul.f32 %v843, %v846
      %vm895 = vcmask 1044480
      %v896 = vrot.slane %v847, 3
      %v897 = vrot.slane %v848, 3
      %v898 = vsel %vm895, %v896, %v897
      %v899 = vrot.slane %v849, 3
      %v900 = vsel %vm895, %v897, %v899
      %v901 = vrot.slane %v850, 3
      %v902 = vrot.slane %v851, 3
      %v903 = vsel %vm895, %v901, %v902
      %v904 = vrot.slane %v852, 3
      %v905 = vsel %vm895, %v902, %v904
      %v906 = vrot.slane %v853, 3
      %v907 = vrot.slane %v854, 3
      %v908 = vsel %vm895, %v906, %v907
      %v909 = vrot.slane %v855, 3
      %v910 = vsel %vm895, %v907, %v909
      %v911 = vrot.slane %v856, 3
      %v912 = vrot.slane %v857, 3
      %v913 = vsel %vm895, %v911, %v912
      %v914 = vrot.slane %v858, 3
      %v915 = vsel %vm895, %v912, %v914
      %v916 = vrot.slane %v859, 3
      %v917 = vrot.slane %v860, 3
      %v918 = vsel %vm895, %v916, %v917
      %v919 = vrot.slane %v861, 3
      %v920 = vsel %vm895, %v917, %v919
      %v921 = vrot.slane %v862, 3
      %v922 = vrot.slane %v863, 3
      %v923 = vsel %vm895, %v921, %v922
      %v924 = vrot.slane %v864, 3
      %v925 = vsel %vm895, %v922, %v924
      %v926 = vrot.slane %v865, 3
      %v927 = vrot.slane %v866, 3
      %v928 = vsel %vm895, %v926, %v927
      %v929 = vrot.slane %v867, 3
      %v930 = vsel %vm895, %v927, %v929
      %v931 = vrot.slane %v868, 3
      %v932 = vrot.slane %v869, 3
      %v933 = vsel %vm895, %v931, %v932
      %v934 = vrot.slane %v870, 3
      %v935 = vsel %vm895, %v932, %v934
      %v952 = vadd.f32 %v793, %v898
      %v953 = vadd.f32 %v794, %v900
      %v954 = vadd.f32 %v795, %v903
      %v955 = vadd.f32 %v796, %v905
      %v956 = vadd.f32 %v797, %v908
      %v957 = vadd.f32 %v798, %v910
      %v958 = vadd.f32 %v799, %v913
      %v959 = vadd.f32 %v800, %v915
      %v960 = vadd.f32 %v801, %v918
      %v961 = vadd.f32 %v802, %v920
      %v962 = vadd.f32 %v803, %v923
      %v963 = vadd.f32 %v804, %v925
      %v964 = vadd.f32 %v805, %v928
      %v965 = vadd.f32 %v806, %v930
      %v966 = vadd.f32 %v807, %v933
      %v967 = vadd.f32 %v808, %v935
      %v968 = vld [vmem:[%s240 + $0x8] sm:$0x1]
      %v969 = vperm.slane %v968, 0
      %v970 = vmul.f32 %v813, %v969
      %v971 = vmul.f32 %v814, %v969
      %v972 = vmul.f32 %v815, %v969
      %v973 = vmul.f32 %v817, %v969
      %v974 = vmul.f32 %v818, %v969
      %v975 = vmul.f32 %v819, %v969
      %v976 = vmul.f32 %v821, %v969
      %v977 = vmul.f32 %v822, %v969
      %v978 = vmul.f32 %v823, %v969
      %v979 = vmul.f32 %v825, %v969
      %v980 = vmul.f32 %v826, %v969
      %v981 = vmul.f32 %v827, %v969
      %v982 = vmul.f32 %v829, %v969
      %v983 = vmul.f32 %v830, %v969
      %v984 = vmul.f32 %v831, %v969
      %v985 = vmul.f32 %v833, %v969
      %v986 = vmul.f32 %v834, %v969
      %v987 = vmul.f32 %v835, %v969
      %v988 = vmul.f32 %v837, %v969
      %v989 = vmul.f32 %v838, %v969
      %v990 = vmul.f32 %v839, %v969
      %v991 = vmul.f32 %v841, %v969
      %v992 = vmul.f32 %v842, %v969
      %v993 = vmul.f32 %v843, %v969
      %vm1018 = vcmask 1043456
      %v1019 = vrot.slane %v970, 4
      %v1020 = vrot.slane %v971, 4
      %v1021 = vsel %vm1018, %v1019, %v1020
      %v1022 = vrot.slane %v972, 4
      %v1023 = vsel %vm1018, %v1020, %v1022
      %v1024 = vrot.slane %v973, 4
      %v1025 = vrot.slane %v974, 4
      %v1026 = vsel %vm1018, %v1024, %v1025
      %v1027 = vrot.slane %v975, 4
      %v1028 = vsel %vm1018, %v1025, %v1027
      %v1029 = vrot.slane %v976, 4
      %v1030 = vrot.slane %v977, 4
      %v1031 = vsel %vm1018, %v1029, %v1030
      %v1032 = vrot.slane %v978, 4
      %v1033 = vsel %vm1018, %v1030, %v1032
      %v1034 = vrot.slane %v979, 4
      %v1035 = vrot.slane %v980, 4
      %v1036 = vsel %vm1018, %v1034, %v1035
      %v1037 = vrot.slane %v981, 4
      %v1038 = vsel %vm1018, %v1035, %v1037
      %v1039 = vrot.slane %v982, 4
      %v1040 = vrot.slane %v983, 4
      %v1041 = vsel %vm1018, %v1039, %v1040
      %v1042 = vrot.slane %v984, 4
      %v1043 = vsel %vm1018, %v1040, %v1042
      %v1044 = vrot.slane %v985, 4
      %v1045 = vrot.slane %v986, 4
      %v1046 = vsel %vm1018, %v1044, %v1045
      %v1047 = vrot.slane %v987, 4
      %v1048 = vsel %vm1018, %v1045, %v1047
      %v1049 = vrot.slane %v988, 4
      %v1050 = vrot.slane %v989, 4
      %v1051 = vsel %vm1018, %v1049, %v1050
      %v1052 = vrot.slane %v990, 4
      %v1053 = vsel %vm1018, %v1050, %v1052
      %v1054 = vrot.slane %v991, 4
      %v1055 = vrot.slane %v992, 4
      %v1056 = vsel %vm1018, %v1054, %v1055
      %v1057 = vrot.slane %v993, 4
      %v1058 = vsel %vm1018, %v1055, %v1057
      %v1075 = vadd.f32 %v952, %v1021
      %v1076 = vadd.f32 %v953, %v1023
      %v1077 = vadd.f32 %v954, %v1026
      %v1078 = vadd.f32 %v955, %v1028
      %v1079 = vadd.f32 %v956, %v1031
      %v1080 = vadd.f32 %v957, %v1033
      %v1081 = vadd.f32 %v958, %v1036
      %v1082 = vadd.f32 %v959, %v1038
      %v1083 = vadd.f32 %v960, %v1041
      %v1084 = vadd.f32 %v961, %v1043
      %v1085 = vadd.f32 %v962, %v1046
      %v1086 = vadd.f32 %v963, %v1048
      %v1087 = vadd.f32 %v964, %v1051
      %v1088 = vadd.f32 %v965, %v1053
      %v1089 = vadd.f32 %v966, %v1056
      %v1090 = vadd.f32 %v967, %v1058
      %v1091 = vld [vmem:[%s240 + $0x9] sm:$0x1]
      %v1092 = vperm.slane %v1091, 0
      %v1093 = vmul.f32 %v813, %v1092
      %v1094 = vmul.f32 %v814, %v1092
      %v1095 = vmul.f32 %v815, %v1092
      %v1096 = vmul.f32 %v817, %v1092
      %v1097 = vmul.f32 %v818, %v1092
      %v1098 = vmul.f32 %v819, %v1092
      %v1099 = vmul.f32 %v821, %v1092
      %v1100 = vmul.f32 %v822, %v1092
      %v1101 = vmul.f32 %v823, %v1092
      %v1102 = vmul.f32 %v825, %v1092
      %v1103 = vmul.f32 %v826, %v1092
      %v1104 = vmul.f32 %v827, %v1092
      %v1105 = vmul.f32 %v829, %v1092
      %v1106 = vmul.f32 %v830, %v1092
      %v1107 = vmul.f32 %v831, %v1092
      %v1108 = vmul.f32 %v833, %v1092
      %v1109 = vmul.f32 %v834, %v1092
      %v1110 = vmul.f32 %v835, %v1092
      %v1111 = vmul.f32 %v837, %v1092
      %v1112 = vmul.f32 %v838, %v1092
      %v1113 = vmul.f32 %v839, %v1092
      %v1114 = vmul.f32 %v841, %v1092
      %v1115 = vmul.f32 %v842, %v1092
      %v1116 = vmul.f32 %v843, %v1092
      %vm1141 = vcmask 1042432
      %v1142 = vrot.slane %v1093, 5
      %v1143 = vrot.slane %v1094, 5
      %v1144 = vsel %vm1141, %v1142, %v1143
      %v1145 = vrot.slane %v1095, 5
      %v1146 = vsel %vm1141, %v1143, %v1145
      %v1147 = vrot.slane %v1096, 5
      %v1148 = vrot.slane %v1097, 5
      %v1149 = vsel %vm1141, %v1147, %v1148
      %v1150 = vrot.slane %v1098, 5
      %v1151 = vsel %vm1141, %v1148, %v1150
      %v1152 = vrot.slane %v1099, 5
      %v1153 = vrot.slane %v1100, 5
      %v1154 = vsel %vm1141, %v1152, %v1153
      %v1155 = vrot.slane %v1101, 5
      %v1156 = vsel %vm1141, %v1153, %v1155
      %v1157 = vrot.slane %v1102, 5
      %v1158 = vrot.slane %v1103, 5
      %v1159 = vsel %vm1141, %v1157, %v1158
      %v1160 = vrot.slane %v1104, 5
      %v1161 = vsel %vm1141, %v1158, %v1160
      %v1162 = vrot.slane %v1105, 5
      %v1163 = vrot.slane %v1106, 5
      %v1164 = vsel %vm1141, %v1162, %v1163
      %v1165 = vrot.slane %v1107, 5
      %v1166 = vsel %vm1141, %v1163, %v1165
      %v1167 = vrot.slane %v1108, 5
      %v1168 = vrot.slane %v1109, 5
      %v1169 = vsel %vm1141, %v1167, %v1168
      %v1170 = vrot.slane %v1110, 5
      %v1171 = vsel %vm1141, %v1168, %v1170
      %v1172 = vrot.slane %v1111, 5
      %v1173 = vrot.slane %v1112, 5
      %v1174 = vsel %vm1141, %v1172, %v1173
      %v1175 = vrot.slane %v1113, 5
      %v1176 = vsel %vm1141, %v1173, %v1175
      %v1177 = vrot.slane %v1114, 5
      %v1178 = vrot.slane %v1115, 5
      %v1179 = vsel %vm1141, %v1177, %v1178
      %v1180 = vrot.slane %v1116, 5
      %v1181 = vsel %vm1141, %v1178, %v1180
      %v1198 = vadd.f32 %v1075, %v1144
      %v1199 = vadd.f32 %v1076, %v1146
      %v1200 = vadd.f32 %v1077, %v1149
      %v1201 = vadd.f32 %v1078, %v1151
      %v1202 = vadd.f32 %v1079, %v1154
      %v1203 = vadd.f32 %v1080, %v1156
      %v1204 = vadd.f32 %v1081, %v1159
      %v1205 = vadd.f32 %v1082, %v1161
      %v1206 = vadd.f32 %v1083, %v1164
      %v1207 = vadd.f32 %v1084, %v1166
      %v1208 = vadd.f32 %v1085, %v1169
      %v1209 = vadd.f32 %v1086, %v1171
      %v1210 = vadd.f32 %v1087, %v1174
      %v1211 = vadd.f32 %v1088, %v1176
      %v1212 = vadd.f32 %v1089, %v1179
      %v1213 = vadd.f32 %v1090, %v1181
      %v1214 = vld [vmem:[%s240 + $0xa] sm:$0x1]
      %v1215 = vperm.slane %v1214, 0
      %v1216 = vmul.f32 %v813, %v1215
      %v1217 = vmul.f32 %v814, %v1215
      %v1218 = vmul.f32 %v815, %v1215
      %v1219 = vmul.f32 %v817, %v1215
      %v1220 = vmul.f32 %v818, %v1215
      %v1221 = vmul.f32 %v819, %v1215
      %v1222 = vmul.f32 %v821, %v1215
      %v1223 = vmul.f32 %v822, %v1215
      %v1224 = vmul.f32 %v823, %v1215
      %v1225 = vmul.f32 %v825, %v1215
      %v1226 = vmul.f32 %v826, %v1215
      %v1227 = vmul.f32 %v827, %v1215
      %v1228 = vmul.f32 %v829, %v1215
      %v1229 = vmul.f32 %v830, %v1215
      %v1230 = vmul.f32 %v831, %v1215
      %v1231 = vmul.f32 %v833, %v1215
      %v1232 = vmul.f32 %v834, %v1215
      %v1233 = vmul.f32 %v835, %v1215
      %v1234 = vmul.f32 %v837, %v1215
      %v1235 = vmul.f32 %v838, %v1215
      %v1236 = vmul.f32 %v839, %v1215
      %v1237 = vmul.f32 %v841, %v1215
      %v1238 = vmul.f32 %v842, %v1215
      %v1239 = vmul.f32 %v843, %v1215
      %vm1264 = vcmask 1041408
      %v1265 = vrot.slane %v1216, 6
      %v1266 = vrot.slane %v1217, 6
      %v1267 = vsel %vm1264, %v1265, %v1266
      %v1268 = vrot.slane %v1218, 6
      %v1269 = vsel %vm1264, %v1266, %v1268
      %v1270 = vrot.slane %v1219, 6
      %v1271 = vrot.slane %v1220, 6
      %v1272 = vsel %vm1264, %v1270, %v1271
      %v1273 = vrot.slane %v1221, 6
      %v1274 = vsel %vm1264, %v1271, %v1273
      %v1275 = vrot.slane %v1222, 6
      %v1276 = vrot.slane %v1223, 6
      %v1277 = vsel %vm1264, %v1275, %v1276
      %v1278 = vrot.slane %v1224, 6
      %v1279 = vsel %vm1264, %v1276, %v1278
      %v1280 = vrot.slane %v1225, 6
      %v1281 = vrot.slane %v1226, 6
      %v1282 = vsel %vm1264, %v1280, %v1281
      %v1283 = vrot.slane %v1227, 6
      %v1284 = vsel %vm1264, %v1281, %v1283
      %v1285 = vrot.slane %v1228, 6
      %v1286 = vrot.slane %v1229, 6
      %v1287 = vsel %vm1264, %v1285, %v1286
      %v1288 = vrot.slane %v1230, 6
      %v1289 = vsel %vm1264, %v1286, %v1288
      %v1290 = vrot.slane %v1231, 6
      %v1291 = vrot.slane %v1232, 6
      %v1292 = vsel %vm1264, %v1290, %v1291
      %v1293 = vrot.slane %v1233, 6
      %v1294 = vsel %vm1264, %v1291, %v1293
      %v1295 = vrot.slane %v1234, 6
      %v1296 = vrot.slane %v1235, 6
      %v1297 = vsel %vm1264, %v1295, %v1296
      %v1298 = vrot.slane %v1236, 6
      %v1299 = vsel %vm1264, %v1296, %v1298
      %v1300 = vrot.slane %v1237, 6
      %v1301 = vrot.slane %v1238, 6
      %v1302 = vsel %vm1264, %v1300, %v1301
      %v1303 = vrot.slane %v1239, 6
      %v1304 = vsel %vm1264, %v1301, %v1303
      %v1321 = vadd.f32 %v1198, %v1267
      %v1322 = vadd.f32 %v1199, %v1269
      %v1323 = vadd.f32 %v1200, %v1272
      %v1324 = vadd.f32 %v1201, %v1274
      %v1325 = vadd.f32 %v1202, %v1277
      %v1326 = vadd.f32 %v1203, %v1279
      %v1327 = vadd.f32 %v1204, %v1282
      %v1328 = vadd.f32 %v1205, %v1284
      %v1329 = vadd.f32 %v1206, %v1287
      %v1330 = vadd.f32 %v1207, %v1289
      %v1331 = vadd.f32 %v1208, %v1292
      %v1332 = vadd.f32 %v1209, %v1294
      %v1333 = vadd.f32 %v1210, %v1297
      %v1334 = vadd.f32 %v1211, %v1299
      %v1335 = vadd.f32 %v1212, %v1302
      %v1336 = vadd.f32 %v1213, %v1304
      %v1337 = vld [vmem:[%s240 + $0xb] sm:$0x1]
      %v1338 = vperm.slane %v1337, 0
      %v1339 = vmul.f32 %v813, %v1338
      %v1340 = vmul.f32 %v814, %v1338
      %v1341 = vmul.f32 %v815, %v1338
      %v1342 = vmul.f32 %v817, %v1338
      %v1343 = vmul.f32 %v818, %v1338
      %v1344 = vmul.f32 %v819, %v1338
      %v1345 = vmul.f32 %v821, %v1338
      %v1346 = vmul.f32 %v822, %v1338
      %v1347 = vmul.f32 %v823, %v1338
      %v1348 = vmul.f32 %v825, %v1338
      %v1349 = vmul.f32 %v826, %v1338
      %v1350 = vmul.f32 %v827, %v1338
      %v1351 = vmul.f32 %v829, %v1338
      %v1352 = vmul.f32 %v830, %v1338
      %v1353 = vmul.f32 %v831, %v1338
      %v1354 = vmul.f32 %v833, %v1338
      %v1355 = vmul.f32 %v834, %v1338
      %v1356 = vmul.f32 %v835, %v1338
      %v1357 = vmul.f32 %v837, %v1338
      %v1358 = vmul.f32 %v838, %v1338
      %v1359 = vmul.f32 %v839, %v1338
      %v1360 = vmul.f32 %v841, %v1338
      %v1361 = vmul.f32 %v842, %v1338
      %v1362 = vmul.f32 %v843, %v1338
      %v1387 = vrot.slane %v1339, 7
      %v1388 = vrot.slane %v1340, 7
      %v1389 = vsel %vm579, %v1387, %v1388
      %v1390 = vrot.slane %v1341, 7
      %v1391 = vsel %vm579, %v1388, %v1390
      %v1392 = vrot.slane %v1342, 7
      %v1393 = vrot.slane %v1343, 7
      %v1394 = vsel %vm579, %v1392, %v1393
      %v1395 = vrot.slane %v1344, 7
      %v1396 = vsel %vm579, %v1393, %v1395
      %v1397 = vrot.slane %v1345, 7
      %v1398 = vrot.slane %v1346, 7
      %v1399 = vsel %vm579, %v1397, %v1398
      %v1400 = vrot.slane %v1347, 7
      %v1401 = vsel %vm579, %v1398, %v1400
      %v1402 = vrot.slane %v1348, 7
      %v1403 = vrot.slane %v1349, 7
      %v1404 = vsel %vm579, %v1402, %v1403
      %v1405 = vrot.slane %v1350, 7
      %v1406 = vsel %vm579, %v1403, %v1405
      %v1407 = vrot.slane %v1351, 7
      %v1408 = vrot.slane %v1352, 7
      %v1409 = vsel %vm579, %v1407, %v1408
      %v1410 = vrot.slane %v1353, 7
      %v1411 = vsel %vm579, %v1408, %v1410
      %v1412 = vrot.slane %v1354, 7
      %v1413 = vrot.slane %v1355, 7
      %v1414 = vsel %vm579, %v1412, %v1413
      %v1415 = vrot.slane %v1356, 7
      %v1416 = vsel %vm579, %v1413, %v1415
      %v1417 = vrot.slane %v1357, 7
      %v1418 = vrot.slane %v1358, 7
      %v1419 = vsel %vm579, %v1417, %v1418
      %v1420 = vrot.slane %v1359, 7
      %v1421 = vsel %vm579, %v1418, %v1420
      %v1422 = vrot.slane %v1360, 7
      %v1423 = vrot.slane %v1361, 7
      %v1424 = vsel %vm579, %v1422, %v1423
      %v1425 = vrot.slane %v1362, 7
      %v1426 = vsel %vm579, %v1423, %v1425
      %v1443 = vadd.f32 %v1321, %v1389
      %v1444 = vadd.f32 %v1322, %v1391
      %v1445 = vadd.f32 %v1323, %v1394
      %v1446 = vadd.f32 %v1324, %v1396
      %v1447 = vadd.f32 %v1325, %v1399
      %v1448 = vadd.f32 %v1326, %v1401
      %v1449 = vadd.f32 %v1327, %v1404
      %v1450 = vadd.f32 %v1328, %v1406
      %v1451 = vadd.f32 %v1329, %v1409
      %v1452 = vadd.f32 %v1330, %v1411
      %v1453 = vadd.f32 %v1331, %v1414
      %v1454 = vadd.f32 %v1332, %v1416
      %v1455 = vadd.f32 %v1333, %v1419
      %v1456 = vadd.f32 %v1334, %v1421
      %v1457 = vadd.f32 %v1335, %v1424
      %v1458 = vadd.f32 %v1336, %v1426
      %v1459 = vld [vmem:[%s240 + $0xc] sm:$0x1]
      %v1460 = vperm.slane %v1459, 0
      %v1461 = vmul.f32 %v814, %v1460
      %v1462 = vmul.f32 %v815, %v1460
      %v1463 = vmul.f32 %v818, %v1460
      %v1464 = vmul.f32 %v819, %v1460
      %v1465 = vmul.f32 %v822, %v1460
      %v1466 = vmul.f32 %v823, %v1460
      %v1467 = vmul.f32 %v826, %v1460
      %v1468 = vmul.f32 %v827, %v1460
      %v1469 = vmul.f32 %v830, %v1460
      %v1470 = vmul.f32 %v831, %v1460
      %v1471 = vmul.f32 %v834, %v1460
      %v1472 = vmul.f32 %v835, %v1460
      %v1473 = vmul.f32 %v838, %v1460
      %v1474 = vmul.f32 %v839, %v1460
      %v1475 = vmul.f32 %v842, %v1460
      %v1476 = vmul.f32 %v843, %v1460
      %v1477 = vadd.f32 %v1443, %v1461
      %v1478 = vadd.f32 %v1444, %v1462
      %v1479 = vadd.f32 %v1445, %v1463
      %v1480 = vadd.f32 %v1446, %v1464
      %v1481 = vadd.f32 %v1447, %v1465
      %v1482 = vadd.f32 %v1448, %v1466
      %v1483 = vadd.f32 %v1449, %v1467
      %v1484 = vadd.f32 %v1450, %v1468
      %v1485 = vadd.f32 %v1451, %v1469
      %v1486 = vadd.f32 %v1452, %v1470
      %v1487 = vadd.f32 %v1453, %v1471
      %v1488 = vadd.f32 %v1454, %v1472
      %v1489 = vadd.f32 %v1455, %v1473
      %v1490 = vadd.f32 %v1456, %v1474
      %v1491 = vadd.f32 %v1457, %v1475
      %v1492 = vadd.f32 %v1458, %v1476
      %v1493 = vld [vmem:[%s240 + $0xd] sm:$0x1]
      %v1494 = vperm.slane %v1493, 0
      %v1495 = vmul.f32 %v814, %v1494
      %v1496 = vmul.f32 %v815, %v1494
      %v1497 = vmul.f32 %v816, %v1494
      %v1498 = vmul.f32 %v818, %v1494
      %v1499 = vmul.f32 %v819, %v1494
      %v1500 = vmul.f32 %v820, %v1494
      %v1501 = vmul.f32 %v822, %v1494
      %v1502 = vmul.f32 %v823, %v1494
      %v1503 = vmul.f32 %v824, %v1494
      %v1504 = vmul.f32 %v826, %v1494
      %v1505 = vmul.f32 %v827, %v1494
      %v1506 = vmul.f32 %v828, %v1494
      %v1507 = vmul.f32 %v830, %v1494
      %v1508 = vmul.f32 %v831, %v1494
      %v1509 = vmul.f32 %v832, %v1494
      %v1510 = vmul.f32 %v834, %v1494
      %v1511 = vmul.f32 %v835, %v1494
      %v1512 = vmul.f32 %v836, %v1494
      %v1513 = vmul.f32 %v838, %v1494
      %v1514 = vmul.f32 %v839, %v1494
      %v1515 = vmul.f32 %v840, %v1494
      %v1516 = vmul.f32 %v842, %v1494
      %v1517 = vmul.f32 %v843, %v1494
      %v1518 = vmul.f32 %v844, %v1494
      %v1543 = vrot.slane %v1495, 1
      %v1544 = vrot.slane %v1496, 1
      %v1545 = vsel %vm736, %v1543, %v1544
      %v1546 = vrot.slane %v1497, 1
      %v1547 = vsel %vm736, %v1544, %v1546
      %v1548 = vrot.slane %v1498, 1
      %v1549 = vrot.slane %v1499, 1
      %v1550 = vsel %vm736, %v1548, %v1549
      %v1551 = vrot.slane %v1500, 1
      %v1552 = vsel %vm736, %v1549, %v1551
      %v1553 = vrot.slane %v1501, 1
      %v1554 = vrot.slane %v1502, 1
      %v1555 = vsel %vm736, %v1553, %v1554
      %v1556 = vrot.slane %v1503, 1
      %v1557 = vsel %vm736, %v1554, %v1556
      %v1558 = vrot.slane %v1504, 1
      %v1559 = vrot.slane %v1505, 1
      %v1560 = vsel %vm736, %v1558, %v1559
      %v1561 = vrot.slane %v1506, 1
      %v1562 = vsel %vm736, %v1559, %v1561
      %v1563 = vrot.slane %v1507, 1
      %v1564 = vrot.slane %v1508, 1
      %v1565 = vsel %vm736, %v1563, %v1564
      %v1566 = vrot.slane %v1509, 1
      %v1567 = vsel %vm736, %v1564, %v1566
      %v1568 = vrot.slane %v1510, 1
      %v1569 = vrot.slane %v1511, 1
      %v1570 = vsel %vm736, %v1568, %v1569
      %v1571 = vrot.slane %v1512, 1
      %v1572 = vsel %vm736, %v1569, %v1571
      %v1573 = vrot.slane %v1513, 1
      %v1574 = vrot.slane %v1514, 1
      %v1575 = vsel %vm736, %v1573, %v1574
      %v1576 = vrot.slane %v1515, 1
      %v1577 = vsel %vm736, %v1574, %v1576
      %v1578 = vrot.slane %v1516, 1
      %v1579 = vrot.slane %v1517, 1
      %v1580 = vsel %vm736, %v1578, %v1579
      %v1581 = vrot.slane %v1518, 1
      %v1582 = vsel %vm736, %v1579, %v1581
      %v1599 = vadd.f32 %v1477, %v1545
      %v1600 = vadd.f32 %v1478, %v1547
      %v1601 = vadd.f32 %v1479, %v1550
      %v1602 = vadd.f32 %v1480, %v1552
      %v1603 = vadd.f32 %v1481, %v1555
      %v1604 = vadd.f32 %v1482, %v1557
      %v1605 = vadd.f32 %v1483, %v1560
      %v1606 = vadd.f32 %v1484, %v1562
      %v1607 = vadd.f32 %v1485, %v1565
      %v1608 = vadd.f32 %v1486, %v1567
      %v1609 = vadd.f32 %v1487, %v1570
      %v1610 = vadd.f32 %v1488, %v1572
      %v1611 = vadd.f32 %v1489, %v1575
      %v1612 = vadd.f32 %v1490, %v1577
      %v1613 = vadd.f32 %v1491, %v1580
      %v1614 = vadd.f32 %v1492, %v1582
      %v1615 = vld [vmem:[%s240 + $0xe] sm:$0x1]
      %v1616 = vperm.slane %v1615, 0
      %v1617 = vmul.f32 %v814, %v1616
      %v1618 = vmul.f32 %v815, %v1616
      %v1619 = vmul.f32 %v816, %v1616
      %v1620 = vmul.f32 %v818, %v1616
      %v1621 = vmul.f32 %v819, %v1616
      %v1622 = vmul.f32 %v820, %v1616
      %v1623 = vmul.f32 %v822, %v1616
      %v1624 = vmul.f32 %v823, %v1616
      %v1625 = vmul.f32 %v824, %v1616
      %v1626 = vmul.f32 %v826, %v1616
      %v1627 = vmul.f32 %v827, %v1616
      %v1628 = vmul.f32 %v828, %v1616
      %v1629 = vmul.f32 %v830, %v1616
      %v1630 = vmul.f32 %v831, %v1616
      %v1631 = vmul.f32 %v832, %v1616
      %v1632 = vmul.f32 %v834, %v1616
      %v1633 = vmul.f32 %v835, %v1616
      %v1634 = vmul.f32 %v836, %v1616
      %v1635 = vmul.f32 %v838, %v1616
      %v1636 = vmul.f32 %v839, %v1616
      %v1637 = vmul.f32 %v840, %v1616
      %v1638 = vmul.f32 %v842, %v1616
      %v1639 = vmul.f32 %v843, %v1616
      %v1640 = vmul.f32 %v844, %v1616
      %vm1665 = vcmask 1045504
      %v1666 = vrot.slane %v1617, 2
      %v1667 = vrot.slane %v1618, 2
      %v1668 = vsel %vm1665, %v1666, %v1667
      %v1669 = vrot.slane %v1619, 2
      %v1670 = vsel %vm1665, %v1667, %v1669
      %v1671 = vrot.slane %v1620, 2
      %v1672 = vrot.slane %v1621, 2
      %v1673 = vsel %vm1665, %v1671, %v1672
      %v1674 = vrot.slane %v1622, 2
      %v1675 = vsel %vm1665, %v1672, %v1674
      %v1676 = vrot.slane %v1623, 2
      %v1677 = vrot.slane %v1624, 2
      %v1678 = vsel %vm1665, %v1676, %v1677
      %v1679 = vrot.slane %v1625, 2
      %v1680 = vsel %vm1665, %v1677, %v1679
      %v1681 = vrot.slane %v1626, 2
      %v1682 = vrot.slane %v1627, 2
      %v1683 = vsel %vm1665, %v1681, %v1682
      %v1684 = vrot.slane %v1628, 2
      %v1685 = vsel %vm1665, %v1682, %v1684
      %v1686 = vrot.slane %v1629, 2
      %v1687 = vrot.slane %v1630, 2
      %v1688 = vsel %vm1665, %v1686, %v1687
      %v1689 = vrot.slane %v1631, 2
      %v1690 = vsel %vm1665, %v1687, %v1689
      %v1691 = vrot.slane %v1632, 2
      %v1692 = vrot.slane %v1633, 2
      %v1693 = vsel %vm1665, %v1691, %v1692
      %v1694 = vrot.slane %v1634, 2
      %v1695 = vsel %vm1665, %v1692, %v1694
      %v1696 = vrot.slane %v1635, 2
      %v1697 = vrot.slane %v1636, 2
      %v1698 = vsel %vm1665, %v1696, %v1697
      %v1699 = vrot.slane %v1637, 2
      %v1700 = vsel %vm1665, %v1697, %v1699
      %v1701 = vrot.slane %v1638, 2
      %v1702 = vrot.slane %v1639, 2
      %v1703 = vsel %vm1665, %v1701, %v1702
      %v1704 = vrot.slane %v1640, 2
      %v1705 = vsel %vm1665, %v1702, %v1704
      %v1722 = vadd.f32 %v1599, %v1668
      %v1723 = vadd.f32 %v1600, %v1670
      %v1724 = vadd.f32 %v1601, %v1673
      %v1725 = vadd.f32 %v1602, %v1675
      %v1726 = vadd.f32 %v1603, %v1678
      %v1727 = vadd.f32 %v1604, %v1680
      %v1728 = vadd.f32 %v1605, %v1683
      %v1729 = vadd.f32 %v1606, %v1685
      %v1730 = vadd.f32 %v1607, %v1688
      %v1731 = vadd.f32 %v1608, %v1690
      %v1732 = vadd.f32 %v1609, %v1693
      %v1733 = vadd.f32 %v1610, %v1695
      %v1734 = vadd.f32 %v1611, %v1698
      %v1735 = vadd.f32 %v1612, %v1700
      %v1736 = vadd.f32 %v1613, %v1703
      %v1737 = vadd.f32 %v1614, %v1705
      %v1738 = vld [vmem:[%s240 + $0xf] sm:$0x1]
      %v1739 = vperm.slane %v1738, 0
      %v1740 = vmul.f32 %v814, %v1739
      %v1741 = vmul.f32 %v815, %v1739
      %v1742 = vmul.f32 %v816, %v1739
      %v1743 = vmul.f32 %v818, %v1739
      %v1744 = vmul.f32 %v819, %v1739
      %v1745 = vmul.f32 %v820, %v1739
      %v1746 = vmul.f32 %v822, %v1739
      %v1747 = vmul.f32 %v823, %v1739
      %v1748 = vmul.f32 %v824, %v1739
      %v1749 = vmul.f32 %v826, %v1739
      %v1750 = vmul.f32 %v827, %v1739
      %v1751 = vmul.f32 %v828, %v1739
      %v1752 = vmul.f32 %v830, %v1739
      %v1753 = vmul.f32 %v831, %v1739
      %v1754 = vmul.f32 %v832, %v1739
      %v1755 = vmul.f32 %v834, %v1739
      %v1756 = vmul.f32 %v835, %v1739
      %v1757 = vmul.f32 %v836, %v1739
      %v1758 = vmul.f32 %v838, %v1739
      %v1759 = vmul.f32 %v839, %v1739
      %v1760 = vmul.f32 %v840, %v1739
      %v1761 = vmul.f32 %v842, %v1739
      %v1762 = vmul.f32 %v843, %v1739
      %v1763 = vmul.f32 %v844, %v1739
      %v1788 = vrot.slane %v1740, 3
      %v1789 = vrot.slane %v1741, 3
      %v1790 = vsel %vm895, %v1788, %v1789
      %v1791 = vrot.slane %v1742, 3
      %v1792 = vsel %vm895, %v1789, %v1791
      %v1793 = vrot.slane %v1743, 3
      %v1794 = vrot.slane %v1744, 3
      %v1795 = vsel %vm895, %v1793, %v1794
      %v1796 = vrot.slane %v1745, 3
      %v1797 = vsel %vm895, %v1794, %v1796
      %v1798 = vrot.slane %v1746, 3
      %v1799 = vrot.slane %v1747, 3
      %v1800 = vsel %vm895, %v1798, %v1799
      %v1801 = vrot.slane %v1748, 3
      %v1802 = vsel %vm895, %v1799, %v1801
      %v1803 = vrot.slane %v1749, 3
      %v1804 = vrot.slane %v1750, 3
      %v1805 = vsel %vm895, %v1803, %v1804
      %v1806 = vrot.slane %v1751, 3
      %v1807 = vsel %vm895, %v1804, %v1806
      %v1808 = vrot.slane %v1752, 3
      %v1809 = vrot.slane %v1753, 3
      %v1810 = vsel %vm895, %v1808, %v1809
      %v1811 = vrot.slane %v1754, 3
      %v1812 = vsel %vm895, %v1809, %v1811
      %v1813 = vrot.slane %v1755, 3
      %v1814 = vrot.slane %v1756, 3
      %v1815 = vsel %vm895, %v1813, %v1814
      %v1816 = vrot.slane %v1757, 3
      %v1817 = vsel %vm895, %v1814, %v1816
      %v1818 = vrot.slane %v1758, 3
      %v1819 = vrot.slane %v1759, 3
      %v1820 = vsel %vm895, %v1818, %v1819
      %v1821 = vrot.slane %v1760, 3
      %v1822 = vsel %vm895, %v1819, %v1821
      %v1823 = vrot.slane %v1761, 3
      %v1824 = vrot.slane %v1762, 3
      %v1825 = vsel %vm895, %v1823, %v1824
      %v1826 = vrot.slane %v1763, 3
      %v1827 = vsel %vm895, %v1824, %v1826
      %v1844 = vadd.f32 %v1722, %v1790
      %v1845 = vadd.f32 %v1723, %v1792
      %v1846 = vadd.f32 %v1724, %v1795
      %v1847 = vadd.f32 %v1725, %v1797
      %v1848 = vadd.f32 %v1726, %v1800
      %v1849 = vadd.f32 %v1727, %v1802
      %v1850 = vadd.f32 %v1728, %v1805
      %v1851 = vadd.f32 %v1729, %v1807
      %v1852 = vadd.f32 %v1730, %v1810
      %v1853 = vadd.f32 %v1731, %v1812
      %v1854 = vadd.f32 %v1732, %v1815
      %v1855 = vadd.f32 %v1733, %v1817
      %v1856 = vadd.f32 %v1734, %v1820
      %v1857 = vadd.f32 %v1735, %v1822
      %v1858 = vadd.f32 %v1736, %v1825
      %v1859 = vadd.f32 %v1737, %v1827
      %v1860 = vld [vmem:[%s240 + $0x10] sm:$0x1]
      %v1861 = vperm.slane %v1860, 0
      %v1862 = vmul.f32 %v814, %v1861
      %v1863 = vmul.f32 %v815, %v1861
      %v1864 = vmul.f32 %v816, %v1861
      %v1865 = vmul.f32 %v818, %v1861
      %v1866 = vmul.f32 %v819, %v1861
      %v1867 = vmul.f32 %v820, %v1861
      %v1868 = vmul.f32 %v822, %v1861
      %v1869 = vmul.f32 %v823, %v1861
      %v1870 = vmul.f32 %v824, %v1861
      %v1871 = vmul.f32 %v826, %v1861
      %v1872 = vmul.f32 %v827, %v1861
      %v1873 = vmul.f32 %v828, %v1861
      %v1874 = vmul.f32 %v830, %v1861
      %v1875 = vmul.f32 %v831, %v1861
      %v1876 = vmul.f32 %v832, %v1861
      %v1877 = vmul.f32 %v834, %v1861
      %v1878 = vmul.f32 %v835, %v1861
      %v1879 = vmul.f32 %v836, %v1861
      %v1880 = vmul.f32 %v838, %v1861
      %v1881 = vmul.f32 %v839, %v1861
      %v1882 = vmul.f32 %v840, %v1861
      %v1883 = vmul.f32 %v842, %v1861
      %v1884 = vmul.f32 %v843, %v1861
      %v1885 = vmul.f32 %v844, %v1861
      %v1910 = vrot.slane %v1862, 4
      %v1911 = vrot.slane %v1863, 4
      %v1912 = vsel %vm1018, %v1910, %v1911
      %v1913 = vrot.slane %v1864, 4
      %v1914 = vsel %vm1018, %v1911, %v1913
      %v1915 = vrot.slane %v1865, 4
      %v1916 = vrot.slane %v1866, 4
      %v1917 = vsel %vm1018, %v1915, %v1916
      %v1918 = vrot.slane %v1867, 4
      %v1919 = vsel %vm1018, %v1916, %v1918
      %v1920 = vrot.slane %v1868, 4
      %v1921 = vrot.slane %v1869, 4
      %v1922 = vsel %vm1018, %v1920, %v1921
      %v1923 = vrot.slane %v1870, 4
      %v1924 = vsel %vm1018, %v1921, %v1923
      %v1925 = vrot.slane %v1871, 4
      %v1926 = vrot.slane %v1872, 4
      %v1927 = vsel %vm1018, %v1925, %v1926
      %v1928 = vrot.slane %v1873, 4
      %v1929 = vsel %vm1018, %v1926, %v1928
      %v1930 = vrot.slane %v1874, 4
      %v1931 = vrot.slane %v1875, 4
      %v1932 = vsel %vm1018, %v1930, %v1931
      %v1933 = vrot.slane %v1876, 4
      %v1934 = vsel %vm1018, %v1931, %v1933
      %v1935 = vrot.slane %v1877, 4
      %v1936 = vrot.slane %v1878, 4
      %v1937 = vsel %vm1018, %v1935, %v1936
      %v1938 = vrot.slane %v1879, 4
      %v1939 = vsel %vm1018, %v1936, %v1938
      %v1940 = vrot.slane %v1880, 4
      %v1941 = vrot.slane %v1881, 4
      %v1942 = vsel %vm1018, %v1940, %v1941
      %v1943 = vrot.slane %v1882, 4
      %v1944 = vsel %vm1018, %v1941, %v1943
      %v1945 = vrot.slane %v1883, 4
      %v1946 = vrot.slane %v1884, 4
      %v1947 = vsel %vm1018, %v1945, %v1946
      %v1948 = vrot.slane %v1885, 4
      %v1949 = vsel %vm1018, %v1946, %v1948
      %v1966 = vadd.f32 %v1844, %v1912
      %v1967 = vadd.f32 %v1845, %v1914
      %v1968 = vadd.f32 %v1846, %v1917
      %v1969 = vadd.f32 %v1847, %v1919
      %v1970 = vadd.f32 %v1848, %v1922
      %v1971 = vadd.f32 %v1849, %v1924
      %v1972 = vadd.f32 %v1850, %v1927
      %v1973 = vadd.f32 %v1851, %v1929
      %v1974 = vadd.f32 %v1852, %v1932
      %v1975 = vadd.f32 %v1853, %v1934
      %v1976 = vadd.f32 %v1854, %v1937
      %v1977 = vadd.f32 %v1855, %v1939
      %v1978 = vadd.f32 %v1856, %v1942
      %v1979 = vadd.f32 %v1857, %v1944
      %v1980 = vadd.f32 %v1858, %v1947
      %v1981 = vadd.f32 %v1859, %v1949
      %v1982 = vld [vmem:[%s240 + $0x11] sm:$0x1]
      %v1983 = vperm.slane %v1982, 0
      %v1984 = vmul.f32 %v814, %v1983
      %v1985 = vmul.f32 %v815, %v1983
      %v1986 = vmul.f32 %v816, %v1983
      %v1987 = vmul.f32 %v818, %v1983
      %v1988 = vmul.f32 %v819, %v1983
      %v1989 = vmul.f32 %v820, %v1983
      %v1990 = vmul.f32 %v822, %v1983
      %v1991 = vmul.f32 %v823, %v1983
      %v1992 = vmul.f32 %v824, %v1983
      %v1993 = vmul.f32 %v826, %v1983
      %v1994 = vmul.f32 %v827, %v1983
      %v1995 = vmul.f32 %v828, %v1983
      %v1996 = vmul.f32 %v830, %v1983
      %v1997 = vmul.f32 %v831, %v1983
      %v1998 = vmul.f32 %v832, %v1983
      %v1999 = vmul.f32 %v834, %v1983
      %v2000 = vmul.f32 %v835, %v1983
      %v2001 = vmul.f32 %v836, %v1983
      %v2002 = vmul.f32 %v838, %v1983
      %v2003 = vmul.f32 %v839, %v1983
      %v2004 = vmul.f32 %v840, %v1983
      %v2005 = vmul.f32 %v842, %v1983
      %v2006 = vmul.f32 %v843, %v1983
      %v2007 = vmul.f32 %v844, %v1983
      %v2032 = vrot.slane %v1984, 5
      %v2033 = vrot.slane %v1985, 5
      %v2034 = vsel %vm1141, %v2032, %v2033
      %v2035 = vrot.slane %v1986, 5
      %v2036 = vsel %vm1141, %v2033, %v2035
      %v2037 = vrot.slane %v1987, 5
      %v2038 = vrot.slane %v1988, 5
      %v2039 = vsel %vm1141, %v2037, %v2038
      %v2040 = vrot.slane %v1989, 5
      %v2041 = vsel %vm1141, %v2038, %v2040
      %v2042 = vrot.slane %v1990, 5
      %v2043 = vrot.slane %v1991, 5
      %v2044 = vsel %vm1141, %v2042, %v2043
      %v2045 = vrot.slane %v1992, 5
      %v2046 = vsel %vm1141, %v2043, %v2045
      %v2047 = vrot.slane %v1993, 5
      %v2048 = vrot.slane %v1994, 5
      %v2049 = vsel %vm1141, %v2047, %v2048
      %v2050 = vrot.slane %v1995, 5
      %v2051 = vsel %vm1141, %v2048, %v2050
      %v2052 = vrot.slane %v1996, 5
      %v2053 = vrot.slane %v1997, 5
      %v2054 = vsel %vm1141, %v2052, %v2053
      %v2055 = vrot.slane %v1998, 5
      %v2056 = vsel %vm1141, %v2053, %v2055
      %v2057 = vrot.slane %v1999, 5
      %v2058 = vrot.slane %v2000, 5
      %v2059 = vsel %vm1141, %v2057, %v2058
      %v2060 = vrot.slane %v2001, 5
      %v2061 = vsel %vm1141, %v2058, %v2060
      %v2062 = vrot.slane %v2002, 5
      %v2063 = vrot.slane %v2003, 5
      %v2064 = vsel %vm1141, %v2062, %v2063
      %v2065 = vrot.slane %v2004, 5
      %v2066 = vsel %vm1141, %v2063, %v2065
      %v2067 = vrot.slane %v2005, 5
      %v2068 = vrot.slane %v2006, 5
      %v2069 = vsel %vm1141, %v2067, %v2068
      %v2070 = vrot.slane %v2007, 5
      %v2071 = vsel %vm1141, %v2068, %v2070
      %v2088 = vadd.f32 %v1966, %v2034
      %v2089 = vadd.f32 %v1967, %v2036
      %v2090 = vadd.f32 %v1968, %v2039
      %v2091 = vadd.f32 %v1969, %v2041
      %v2092 = vadd.f32 %v1970, %v2044
      %v2093 = vadd.f32 %v1971, %v2046
      %v2094 = vadd.f32 %v1972, %v2049
      %v2095 = vadd.f32 %v1973, %v2051
      %v2096 = vadd.f32 %v1974, %v2054
      %v2097 = vadd.f32 %v1975, %v2056
      %v2098 = vadd.f32 %v1976, %v2059
      %v2099 = vadd.f32 %v1977, %v2061
      %v2100 = vadd.f32 %v1978, %v2064
      %v2101 = vadd.f32 %v1979, %v2066
      %v2102 = vadd.f32 %v1980, %v2069
      %v2103 = vadd.f32 %v1981, %v2071
      %s2104 = sadd.s32 %s271, 6
      %s2105 = smul.u32 %s2104, 32
      %s2106 = sadd.s32 %s272, %s2105
      %s2107 = scalar_lea.vmem %s251, %s2106
      %v2108 = vld [vmem:[%s2107] sm:$0xff]
      %v2109 = vld [vmem:[%s2107 + $0x8] sm:$0xff]
      %v2110 = vld [vmem:[%s2107 + $0x10] sm:$0xff]
      %v2111 = vld [vmem:[%s2107 + $0x18] sm:$0x1]
      %v2112 = vld [vmem:[%s2107 + $0x20] sm:$0xff]
      %v2113 = vld [vmem:[%s2107 + $0x28] sm:$0xff]
      %v2114 = vld [vmem:[%s2107 + $0x30] sm:$0xff]
      %v2115 = vld [vmem:[%s2107 + $0x38] sm:$0x1]
      %v2116 = vld [vmem:[%s2107 + $0x40] sm:$0xff]
      %v2117 = vld [vmem:[%s2107 + $0x48] sm:$0xff]
      %v2118 = vld [vmem:[%s2107 + $0x50] sm:$0xff]
      %v2119 = vld [vmem:[%s2107 + $0x58] sm:$0x1]
      %v2120 = vld [vmem:[%s2107 + $0x60] sm:$0xff]
      %v2121 = vld [vmem:[%s2107 + $0x68] sm:$0xff]
      %v2122 = vld [vmem:[%s2107 + $0x70] sm:$0xff]
      %v2123 = vld [vmem:[%s2107 + $0x78] sm:$0x1]
      %v2124 = vld [vmem:[%s2107 + $0x80] sm:$0xff]
      %v2125 = vld [vmem:[%s2107 + $0x88] sm:$0xff]
      %v2126 = vld [vmem:[%s2107 + $0x90] sm:$0xff]
      %v2127 = vld [vmem:[%s2107 + $0x98] sm:$0x1]
      %v2128 = vld [vmem:[%s2107 + $0xa0] sm:$0xff]
      %v2129 = vld [vmem:[%s2107 + $0xa8] sm:$0xff]
      %v2130 = vld [vmem:[%s2107 + $0xb0] sm:$0xff]
      %v2131 = vld [vmem:[%s2107 + $0xb8] sm:$0x1]
      %v2132 = vld [vmem:[%s2107 + $0xc0] sm:$0xff]
      %v2133 = vld [vmem:[%s2107 + $0xc8] sm:$0xff]
      %v2134 = vld [vmem:[%s2107 + $0xd0] sm:$0xff]
      %v2135 = vld [vmem:[%s2107 + $0xd8] sm:$0x1]
      %v2136 = vld [vmem:[%s2107 + $0xe0] sm:$0xff]
      %v2137 = vld [vmem:[%s2107 + $0xe8] sm:$0xff]
      %v2138 = vld [vmem:[%s2107 + $0xf0] sm:$0xff]
      %v2139 = vld [vmem:[%s2107 + $0xf8] sm:$0x1]
      %v2140 = vld [vmem:[%s240 + $0x12] sm:$0x1]
      %v2141 = vperm.slane %v2140, 0
      %v2142 = vmul.f32 %v2108, %v2141
      %v2143 = vmul.f32 %v2109, %v2141
      %v2144 = vmul.f32 %v2110, %v2141
      %v2145 = vmul.f32 %v2112, %v2141
      %v2146 = vmul.f32 %v2113, %v2141
      %v2147 = vmul.f32 %v2114, %v2141
      %v2148 = vmul.f32 %v2116, %v2141
      %v2149 = vmul.f32 %v2117, %v2141
      %v2150 = vmul.f32 %v2118, %v2141
      %v2151 = vmul.f32 %v2120, %v2141
      %v2152 = vmul.f32 %v2121, %v2141
      %v2153 = vmul.f32 %v2122, %v2141
      %v2154 = vmul.f32 %v2124, %v2141
      %v2155 = vmul.f32 %v2125, %v2141
      %v2156 = vmul.f32 %v2126, %v2141
      %v2157 = vmul.f32 %v2128, %v2141
      %v2158 = vmul.f32 %v2129, %v2141
      %v2159 = vmul.f32 %v2130, %v2141
      %v2160 = vmul.f32 %v2132, %v2141
      %v2161 = vmul.f32 %v2133, %v2141
      %v2162 = vmul.f32 %v2134, %v2141
      %v2163 = vmul.f32 %v2136, %v2141
      %v2164 = vmul.f32 %v2137, %v2141
      %v2165 = vmul.f32 %v2138, %v2141
      %v2190 = vrot.slane %v2142, 7
      %v2191 = vrot.slane %v2143, 7
      %v2192 = vsel %vm579, %v2190, %v2191
      %v2193 = vrot.slane %v2144, 7
      %v2194 = vsel %vm579, %v2191, %v2193
      %v2195 = vrot.slane %v2145, 7
      %v2196 = vrot.slane %v2146, 7
      %v2197 = vsel %vm579, %v2195, %v2196
      %v2198 = vrot.slane %v2147, 7
      %v2199 = vsel %vm579, %v2196, %v2198
      %v2200 = vrot.slane %v2148, 7
      %v2201 = vrot.slane %v2149, 7
      %v2202 = vsel %vm579, %v2200, %v2201
      %v2203 = vrot.slane %v2150, 7
      %v2204 = vsel %vm579, %v2201, %v2203
      %v2205 = vrot.slane %v2151, 7
      %v2206 = vrot.slane %v2152, 7
      %v2207 = vsel %vm579, %v2205, %v2206
      %v2208 = vrot.slane %v2153, 7
      %v2209 = vsel %vm579, %v2206, %v2208
      %v2210 = vrot.slane %v2154, 7
      %v2211 = vrot.slane %v2155, 7
      %v2212 = vsel %vm579, %v2210, %v2211
      %v2213 = vrot.slane %v2156, 7
      %v2214 = vsel %vm579, %v2211, %v2213
      %v2215 = vrot.slane %v2157, 7
      %v2216 = vrot.slane %v2158, 7
      %v2217 = vsel %vm579, %v2215, %v2216
      %v2218 = vrot.slane %v2159, 7
      %v2219 = vsel %vm579, %v2216, %v2218
      %v2220 = vrot.slane %v2160, 7
      %v2221 = vrot.slane %v2161, 7
      %v2222 = vsel %vm579, %v2220, %v2221
      %v2223 = vrot.slane %v2162, 7
      %v2224 = vsel %vm579, %v2221, %v2223
      %v2225 = vrot.slane %v2163, 7
      %v2226 = vrot.slane %v2164, 7
      %v2227 = vsel %vm579, %v2225, %v2226
      %v2228 = vrot.slane %v2165, 7
      %v2229 = vsel %vm579, %v2226, %v2228
      %v2246 = vadd.f32 %v2088, %v2192
      %v2247 = vadd.f32 %v2089, %v2194
      %v2248 = vadd.f32 %v2090, %v2197
      %v2249 = vadd.f32 %v2091, %v2199
      %v2250 = vadd.f32 %v2092, %v2202
      %v2251 = vadd.f32 %v2093, %v2204
      %v2252 = vadd.f32 %v2094, %v2207
      %v2253 = vadd.f32 %v2095, %v2209
      %v2254 = vadd.f32 %v2096, %v2212
      %v2255 = vadd.f32 %v2097, %v2214
      %v2256 = vadd.f32 %v2098, %v2217
      %v2257 = vadd.f32 %v2099, %v2219
      %v2258 = vadd.f32 %v2100, %v2222
      %v2259 = vadd.f32 %v2101, %v2224
      %v2260 = vadd.f32 %v2102, %v2227
      %v2261 = vadd.f32 %v2103, %v2229
      %v2262 = vld [vmem:[%s240 + $0x13] sm:$0x1]
      %v2263 = vperm.slane %v2262, 0
      %v2264 = vmul.f32 %v2109, %v2263
      %v2265 = vmul.f32 %v2110, %v2263
      %v2266 = vmul.f32 %v2113, %v2263
      %v2267 = vmul.f32 %v2114, %v2263
      %v2268 = vmul.f32 %v2117, %v2263
      %v2269 = vmul.f32 %v2118, %v2263
      %v2270 = vmul.f32 %v2121, %v2263
      %v2271 = vmul.f32 %v2122, %v2263
      %v2272 = vmul.f32 %v2125, %v2263
      %v2273 = vmul.f32 %v2126, %v2263
      %v2274 = vmul.f32 %v2129, %v2263
      %v2275 = vmul.f32 %v2130, %v2263
      %v2276 = vmul.f32 %v2133, %v2263
      %v2277 = vmul.f32 %v2134, %v2263
      %v2278 = vmul.f32 %v2137, %v2263
      %v2279 = vmul.f32 %v2138, %v2263
      %v2280 = vadd.f32 %v2246, %v2264
      %v2281 = vadd.f32 %v2247, %v2265
      %v2282 = vadd.f32 %v2248, %v2266
      %v2283 = vadd.f32 %v2249, %v2267
      %v2284 = vadd.f32 %v2250, %v2268
      %v2285 = vadd.f32 %v2251, %v2269
      %v2286 = vadd.f32 %v2252, %v2270
      %v2287 = vadd.f32 %v2253, %v2271
      %v2288 = vadd.f32 %v2254, %v2272
      %v2289 = vadd.f32 %v2255, %v2273
      %v2290 = vadd.f32 %v2256, %v2274
      %v2291 = vadd.f32 %v2257, %v2275
      %v2292 = vadd.f32 %v2258, %v2276
      %v2293 = vadd.f32 %v2259, %v2277
      %v2294 = vadd.f32 %v2260, %v2278
      %v2295 = vadd.f32 %v2261, %v2279
      %v2296 = vld [vmem:[%s240 + $0x14] sm:$0x1]
      %v2297 = vperm.slane %v2296, 0
      %v2298 = vmul.f32 %v2109, %v2297
      %v2299 = vmul.f32 %v2110, %v2297
      %v2300 = vmul.f32 %v2111, %v2297
      %v2301 = vmul.f32 %v2113, %v2297
      %v2302 = vmul.f32 %v2114, %v2297
      %v2303 = vmul.f32 %v2115, %v2297
      %v2304 = vmul.f32 %v2117, %v2297
      %v2305 = vmul.f32 %v2118, %v2297
      %v2306 = vmul.f32 %v2119, %v2297
      %v2307 = vmul.f32 %v2121, %v2297
      %v2308 = vmul.f32 %v2122, %v2297
      %v2309 = vmul.f32 %v2123, %v2297
      %v2310 = vmul.f32 %v2125, %v2297
      %v2311 = vmul.f32 %v2126, %v2297
      %v2312 = vmul.f32 %v2127, %v2297
      %v2313 = vmul.f32 %v2129, %v2297
      %v2314 = vmul.f32 %v2130, %v2297
      %v2315 = vmul.f32 %v2131, %v2297
      %v2316 = vmul.f32 %v2133, %v2297
      %v2317 = vmul.f32 %v2134, %v2297
      %v2318 = vmul.f32 %v2135, %v2297
      %v2319 = vmul.f32 %v2137, %v2297
      %v2320 = vmul.f32 %v2138, %v2297
      %v2321 = vmul.f32 %v2139, %v2297
      %v2346 = vrot.slane %v2298, 1
      %v2347 = vrot.slane %v2299, 1
      %v2348 = vsel %vm736, %v2346, %v2347
      %v2349 = vrot.slane %v2300, 1
      %v2350 = vsel %vm736, %v2347, %v2349
      %v2351 = vrot.slane %v2301, 1
      %v2352 = vrot.slane %v2302, 1
      %v2353 = vsel %vm736, %v2351, %v2352
      %v2354 = vrot.slane %v2303, 1
      %v2355 = vsel %vm736, %v2352, %v2354
      %v2356 = vrot.slane %v2304, 1
      %v2357 = vrot.slane %v2305, 1
      %v2358 = vsel %vm736, %v2356, %v2357
      %v2359 = vrot.slane %v2306, 1
      %v2360 = vsel %vm736, %v2357, %v2359
      %v2361 = vrot.slane %v2307, 1
      %v2362 = vrot.slane %v2308, 1
      %v2363 = vsel %vm736, %v2361, %v2362
      %v2364 = vrot.slane %v2309, 1
      %v2365 = vsel %vm736, %v2362, %v2364
      %v2366 = vrot.slane %v2310, 1
      %v2367 = vrot.slane %v2311, 1
      %v2368 = vsel %vm736, %v2366, %v2367
      %v2369 = vrot.slane %v2312, 1
      %v2370 = vsel %vm736, %v2367, %v2369
      %v2371 = vrot.slane %v2313, 1
      %v2372 = vrot.slane %v2314, 1
      %v2373 = vsel %vm736, %v2371, %v2372
      %v2374 = vrot.slane %v2315, 1
      %v2375 = vsel %vm736, %v2372, %v2374
      %v2376 = vrot.slane %v2316, 1
      %v2377 = vrot.slane %v2317, 1
      %v2378 = vsel %vm736, %v2376, %v2377
      %v2379 = vrot.slane %v2318, 1
      %v2380 = vsel %vm736, %v2377, %v2379
      %v2381 = vrot.slane %v2319, 1
      %v2382 = vrot.slane %v2320, 1
      %v2383 = vsel %vm736, %v2381, %v2382
      %v2384 = vrot.slane %v2321, 1
      %v2385 = vsel %vm736, %v2382, %v2384
      %v2402 = vadd.f32 %v2280, %v2348
      %v2403 = vadd.f32 %v2281, %v2350
      %v2404 = vadd.f32 %v2282, %v2353
      %v2405 = vadd.f32 %v2283, %v2355
      %v2406 = vadd.f32 %v2284, %v2358
      %v2407 = vadd.f32 %v2285, %v2360
      %v2408 = vadd.f32 %v2286, %v2363
      %v2409 = vadd.f32 %v2287, %v2365
      %v2410 = vadd.f32 %v2288, %v2368
      %v2411 = vadd.f32 %v2289, %v2370
      %v2412 = vadd.f32 %v2290, %v2373
      %v2413 = vadd.f32 %v2291, %v2375
      %v2414 = vadd.f32 %v2292, %v2378
      %v2415 = vadd.f32 %v2293, %v2380
      %v2416 = vadd.f32 %v2294, %v2383
      %v2417 = vadd.f32 %v2295, %v2385
      %s2418 = sadd.s32 %s271, 7
      %s2419 = smul.u32 %s2418, 32
      %s2420 = sadd.s32 %s277, %s2419
      %s2421 = scalar_lea.vmem %s251, %s2420
      %v2422 = vld [vmem:[%s2421] sm:$0xff]
      %v2423 = vld [vmem:[%s2421 + $0x8] sm:$0xff]
      %v2424 = vld [vmem:[%s2421 + $0x20] sm:$0xff]
      %v2425 = vld [vmem:[%s2421 + $0x28] sm:$0xff]
      %v2426 = vld [vmem:[%s2421 + $0x40] sm:$0xff]
      %v2427 = vld [vmem:[%s2421 + $0x48] sm:$0xff]
      %v2428 = vld [vmem:[%s2421 + $0x60] sm:$0xff]
      %v2429 = vld [vmem:[%s2421 + $0x68] sm:$0xff]
      %v2430 = vld [vmem:[%s2421 + $0x80] sm:$0xff]
      %v2431 = vld [vmem:[%s2421 + $0x88] sm:$0xff]
      %v2432 = vld [vmem:[%s2421 + $0xa0] sm:$0xff]
      %v2433 = vld [vmem:[%s2421 + $0xa8] sm:$0xff]
      %v2434 = vld [vmem:[%s2421 + $0xc0] sm:$0xff]
      %v2435 = vld [vmem:[%s2421 + $0xc8] sm:$0xff]
      %v2436 = vld [vmem:[%s2421 + $0xe0] sm:$0xff]
      %v2437 = vld [vmem:[%s2421 + $0xe8] sm:$0xff]
      %v2438 = vld [vmem:[%s240 + $0x15] sm:$0x1]
      %v2439 = vperm.slane %v2438, 0
      %v2440 = vmul.f32 %v2422, %v2439
      %v2441 = vmul.f32 %v2423, %v2439
      %v2442 = vmul.f32 %v2424, %v2439
      %v2443 = vmul.f32 %v2425, %v2439
      %v2444 = vmul.f32 %v2426, %v2439
      %v2445 = vmul.f32 %v2427, %v2439
      %v2446 = vmul.f32 %v2428, %v2439
      %v2447 = vmul.f32 %v2429, %v2439
      %v2448 = vmul.f32 %v2430, %v2439
      %v2449 = vmul.f32 %v2431, %v2439
      %v2450 = vmul.f32 %v2432, %v2439
      %v2451 = vmul.f32 %v2433, %v2439
      %v2452 = vmul.f32 %v2434, %v2439
      %v2453 = vmul.f32 %v2435, %v2439
      %v2454 = vmul.f32 %v2436, %v2439
      %v2455 = vmul.f32 %v2437, %v2439
      %v2456 = vadd.f32 %v2402, %v2440
      %v2457 = vadd.f32 %v2403, %v2441
      %v2458 = vadd.f32 %v2404, %v2442
      %v2459 = vadd.f32 %v2405, %v2443
      %v2460 = vadd.f32 %v2406, %v2444
      %v2461 = vadd.f32 %v2407, %v2445
      %v2462 = vadd.f32 %v2408, %v2446
      %v2463 = vadd.f32 %v2409, %v2447
      %v2464 = vadd.f32 %v2410, %v2448
      %v2465 = vadd.f32 %v2411, %v2449
      %v2466 = vadd.f32 %v2412, %v2450
      %v2467 = vadd.f32 %v2413, %v2451
      %v2468 = vadd.f32 %v2414, %v2452
      %v2469 = vadd.f32 %v2415, %v2453
      %v2470 = vadd.f32 %v2416, %v2454
      %v2471 = vadd.f32 %v2417, %v2455
      %s2472 = sadd.s32 %s271, 8
      %s2473 = smul.u32 %s2472, 32
      %s2474 = sadd.s32 %s277, %s2473
      %s2475 = scalar_lea.vmem %s251, %s2474
      %v2476 = vld [vmem:[%s2475] sm:$0xff]
      %v2477 = vld [vmem:[%s2475 + $0x8] sm:$0xff]
      %v2478 = vld [vmem:[%s2475 + $0x20] sm:$0xff]
      %v2479 = vld [vmem:[%s2475 + $0x28] sm:$0xff]
      %v2480 = vld [vmem:[%s2475 + $0x40] sm:$0xff]
      %v2481 = vld [vmem:[%s2475 + $0x48] sm:$0xff]
      %v2482 = vld [vmem:[%s2475 + $0x60] sm:$0xff]
      %v2483 = vld [vmem:[%s2475 + $0x68] sm:$0xff]
      %v2484 = vld [vmem:[%s2475 + $0x80] sm:$0xff]
      %v2485 = vld [vmem:[%s2475 + $0x88] sm:$0xff]
      %v2486 = vld [vmem:[%s2475 + $0xa0] sm:$0xff]
      %v2487 = vld [vmem:[%s2475 + $0xa8] sm:$0xff]
      %v2488 = vld [vmem:[%s2475 + $0xc0] sm:$0xff]
      %v2489 = vld [vmem:[%s2475 + $0xc8] sm:$0xff]
      %v2490 = vld [vmem:[%s2475 + $0xe0] sm:$0xff]
      %v2491 = vld [vmem:[%s2475 + $0xe8] sm:$0xff]
      %v2492 = vld [vmem:[%s240 + $0x16] sm:$0x1]
      %v2493 = vperm.slane %v2492, 0
      %v2494 = vmul.f32 %v2476, %v2493
      %v2495 = vmul.f32 %v2477, %v2493
      %v2496 = vmul.f32 %v2478, %v2493
      %v2497 = vmul.f32 %v2479, %v2493
      %v2498 = vmul.f32 %v2480, %v2493
      %v2499 = vmul.f32 %v2481, %v2493
      %v2500 = vmul.f32 %v2482, %v2493
      %v2501 = vmul.f32 %v2483, %v2493
      %v2502 = vmul.f32 %v2484, %v2493
      %v2503 = vmul.f32 %v2485, %v2493
      %v2504 = vmul.f32 %v2486, %v2493
      %v2505 = vmul.f32 %v2487, %v2493
      %v2506 = vmul.f32 %v2488, %v2493
      %v2507 = vmul.f32 %v2489, %v2493
      %v2508 = vmul.f32 %v2490, %v2493
      %v2509 = vmul.f32 %v2491, %v2493
      %v2510 = vadd.f32 %v2456, %v2494
      %v2511 = vadd.f32 %v2457, %v2495
      %v2512 = vadd.f32 %v2458, %v2496
      %v2513 = vadd.f32 %v2459, %v2497
      %v2514 = vadd.f32 %v2460, %v2498
      %v2515 = vadd.f32 %v2461, %v2499
      %v2516 = vadd.f32 %v2462, %v2500
      %v2517 = vadd.f32 %v2463, %v2501
      %v2518 = vadd.f32 %v2464, %v2502
      %v2519 = vadd.f32 %v2465, %v2503
      %v2520 = vadd.f32 %v2466, %v2504
      %v2521 = vadd.f32 %v2467, %v2505
      %v2522 = vadd.f32 %v2468, %v2506
      %v2523 = vadd.f32 %v2469, %v2507
      %v2524 = vadd.f32 %v2470, %v2508
      %v2525 = vadd.f32 %v2471, %v2509
      %s2526 = sadd.s32 %s271, 9
      %s2527 = smul.u32 %s2526, 32
      %s2528 = sadd.s32 %s277, %s2527
      %s2529 = scalar_lea.vmem %s251, %s2528
      %v2530 = vld [vmem:[%s2529] sm:$0xff]
      %v2531 = vld [vmem:[%s2529 + $0x8] sm:$0xff]
      %v2532 = vld [vmem:[%s2529 + $0x20] sm:$0xff]
      %v2533 = vld [vmem:[%s2529 + $0x28] sm:$0xff]
      %v2534 = vld [vmem:[%s2529 + $0x40] sm:$0xff]
      %v2535 = vld [vmem:[%s2529 + $0x48] sm:$0xff]
      %v2536 = vld [vmem:[%s2529 + $0x60] sm:$0xff]
      %v2537 = vld [vmem:[%s2529 + $0x68] sm:$0xff]
      %v2538 = vld [vmem:[%s2529 + $0x80] sm:$0xff]
      %v2539 = vld [vmem:[%s2529 + $0x88] sm:$0xff]
      %v2540 = vld [vmem:[%s2529 + $0xa0] sm:$0xff]
      %v2541 = vld [vmem:[%s2529 + $0xa8] sm:$0xff]
      %v2542 = vld [vmem:[%s2529 + $0xc0] sm:$0xff]
      %v2543 = vld [vmem:[%s2529 + $0xc8] sm:$0xff]
      %v2544 = vld [vmem:[%s2529 + $0xe0] sm:$0xff]
      %v2545 = vld [vmem:[%s2529 + $0xe8] sm:$0xff]
      %v2546 = vld [vmem:[%s240 + $0x17] sm:$0x1]
      %v2547 = vperm.slane %v2546, 0
      %v2548 = vmul.f32 %v2530, %v2547
      %v2549 = vmul.f32 %v2531, %v2547
      %v2550 = vmul.f32 %v2532, %v2547
      %v2551 = vmul.f32 %v2533, %v2547
      %v2552 = vmul.f32 %v2534, %v2547
      %v2553 = vmul.f32 %v2535, %v2547
      %v2554 = vmul.f32 %v2536, %v2547
      %v2555 = vmul.f32 %v2537, %v2547
      %v2556 = vmul.f32 %v2538, %v2547
      %v2557 = vmul.f32 %v2539, %v2547
      %v2558 = vmul.f32 %v2540, %v2547
      %v2559 = vmul.f32 %v2541, %v2547
      %v2560 = vmul.f32 %v2542, %v2547
      %v2561 = vmul.f32 %v2543, %v2547
      %v2562 = vmul.f32 %v2544, %v2547
      %v2563 = vmul.f32 %v2545, %v2547
      %v2564 = vadd.f32 %v2510, %v2548
      %v2565 = vadd.f32 %v2511, %v2549
      %v2566 = vadd.f32 %v2512, %v2550
      %v2567 = vadd.f32 %v2513, %v2551
      %v2568 = vadd.f32 %v2514, %v2552
      %v2569 = vadd.f32 %v2515, %v2553
      %v2570 = vadd.f32 %v2516, %v2554
      %v2571 = vadd.f32 %v2517, %v2555
      %v2572 = vadd.f32 %v2518, %v2556
      %v2573 = vadd.f32 %v2519, %v2557
      %v2574 = vadd.f32 %v2520, %v2558
      %v2575 = vadd.f32 %v2521, %v2559
      %v2576 = vadd.f32 %v2522, %v2560
      %v2577 = vadd.f32 %v2523, %v2561
      %v2578 = vadd.f32 %v2524, %v2562
      %v2579 = vadd.f32 %v2525, %v2563
      %s2580 = sadd.s32 %s271, 10
      %s2581 = smul.u32 %s2580, 32
      %s2582 = sadd.s32 %s277, %s2581
      %s2583 = scalar_lea.vmem %s251, %s2582
      %v2584 = vld [vmem:[%s2583] sm:$0xff]
      %v2585 = vld [vmem:[%s2583 + $0x8] sm:$0xff]
      %v2586 = vld [vmem:[%s2583 + $0x20] sm:$0xff]
      %v2587 = vld [vmem:[%s2583 + $0x28] sm:$0xff]
      %v2588 = vld [vmem:[%s2583 + $0x40] sm:$0xff]
      %v2589 = vld [vmem:[%s2583 + $0x48] sm:$0xff]
      %v2590 = vld [vmem:[%s2583 + $0x60] sm:$0xff]
      %v2591 = vld [vmem:[%s2583 + $0x68] sm:$0xff]
      %v2592 = vld [vmem:[%s2583 + $0x80] sm:$0xff]
      %v2593 = vld [vmem:[%s2583 + $0x88] sm:$0xff]
      %v2594 = vld [vmem:[%s2583 + $0xa0] sm:$0xff]
      %v2595 = vld [vmem:[%s2583 + $0xa8] sm:$0xff]
      %v2596 = vld [vmem:[%s2583 + $0xc0] sm:$0xff]
      %v2597 = vld [vmem:[%s2583 + $0xc8] sm:$0xff]
      %v2598 = vld [vmem:[%s2583 + $0xe0] sm:$0xff]
      %v2599 = vld [vmem:[%s2583 + $0xe8] sm:$0xff]
      %v2600 = vld [vmem:[%s240 + $0x18] sm:$0x1]
      %v2601 = vperm.slane %v2600, 0
      %v2602 = vmul.f32 %v2584, %v2601
      %v2603 = vmul.f32 %v2585, %v2601
      %v2604 = vmul.f32 %v2586, %v2601
      %v2605 = vmul.f32 %v2587, %v2601
      %v2606 = vmul.f32 %v2588, %v2601
      %v2607 = vmul.f32 %v2589, %v2601
      %v2608 = vmul.f32 %v2590, %v2601
      %v2609 = vmul.f32 %v2591, %v2601
      %v2610 = vmul.f32 %v2592, %v2601
      %v2611 = vmul.f32 %v2593, %v2601
      %v2612 = vmul.f32 %v2594, %v2601
      %v2613 = vmul.f32 %v2595, %v2601
      %v2614 = vmul.f32 %v2596, %v2601
      %v2615 = vmul.f32 %v2597, %v2601
      %v2616 = vmul.f32 %v2598, %v2601
      %v2617 = vmul.f32 %v2599, %v2601
      %v2618 = vadd.f32 %v2564, %v2602
      %v2619 = vadd.f32 %v2565, %v2603
      %v2620 = vadd.f32 %v2566, %v2604
      %v2621 = vadd.f32 %v2567, %v2605
      %v2622 = vadd.f32 %v2568, %v2606
      %v2623 = vadd.f32 %v2569, %v2607
      %v2624 = vadd.f32 %v2570, %v2608
      %v2625 = vadd.f32 %v2571, %v2609
      %v2626 = vadd.f32 %v2572, %v2610
      %v2627 = vadd.f32 %v2573, %v2611
      %v2628 = vadd.f32 %v2574, %v2612
      %v2629 = vadd.f32 %v2575, %v2613
      %v2630 = vadd.f32 %v2576, %v2614
      %v2631 = vadd.f32 %v2577, %v2615
      %v2632 = vadd.f32 %v2578, %v2616
      %v2633 = vadd.f32 %v2579, %v2617
      %2634 = vst [vmem:[%s268] sm:$0xff] %v2618
      %2635 = vst [vmem:[%s268 + $0x8] sm:$0xff] %v2619
      %2636 = vst [vmem:[%s268 + $0x10] sm:$0xff] %v2620
      %2637 = vst [vmem:[%s268 + $0x18] sm:$0xff] %v2621
      %2638 = vst [vmem:[%s268 + $0x20] sm:$0xff] %v2622
      %2639 = vst [vmem:[%s268 + $0x28] sm:$0xff] %v2623
      %2640 = vst [vmem:[%s268 + $0x30] sm:$0xff] %v2624
      %2641 = vst [vmem:[%s268 + $0x38] sm:$0xff] %v2625
      %2642 = vst [vmem:[%s268 + $0x40] sm:$0xff] %v2626
      %2643 = vst [vmem:[%s268 + $0x48] sm:$0xff] %v2627
      %2644 = vst [vmem:[%s268 + $0x50] sm:$0xff] %v2628
      %2645 = vst [vmem:[%s268 + $0x58] sm:$0xff] %v2629
      %2646 = vst [vmem:[%s268 + $0x60] sm:$0xff] %v2630
      %2647 = vst [vmem:[%s268 + $0x68] sm:$0xff] %v2631
      %2648 = vst [vmem:[%s268 + $0x70] sm:$0xff] %v2632
      %2649 = vst [vmem:[%s268 + $0x78] sm:$0xff] %v2633
      %s2650 = smul.u32 8, %s22
      %s2651 = smul.u32 2, %s23
      %p2652 = scmp.lt.s32.totalorder %s20, 1
      %s2653 = scalar_select %p2652, %s20, 1
      %p2654 = scmp.lt.s32.totalorder %s2650, 15
      %s2655 = scalar_select %p2654, %s2650, 15
      %p2656 = scmp.lt.s32.totalorder %s2651, 1
      %s2657 = scalar_select %p2656, %s2651, 1
      %p2658 = scmp.lt.s32.totalorder %s21, 0
      %s2659 = scalar_select %p2658, %s21, 0
      %s2660 = sadd.s32 %s2659, %s2657
      %s2661 = smul.addr %s2655, 2
      %s2662 = sadd.s32 %s2660, %s2661
      %s2663 = smul.addr %s2653, 32
      %s2664 = sadd.s32 %s2662, %s2663
      %s2665 = smul.addr %s2664, 8
      %s2666 = scalar_lea.vmem %s3, %s2665
      // Predicated region
      $region33: #{inception_dwconv2d.1} parent=31 // pred_check
        %p2667 = pneg %p144
      $region34: #{inception_dwconv2d.1} parent=31 // pred_check_branch
        %2669 = sbr.rel (%p2667) target = $region36
      $region35: #{inception_dwconv2d.1} parent=31 // pred_region
        %s2670 = smul.u32 8, %s22
        %s2671 = smul.u32 2, %s23
      $region36: #{inception_dwconv2d.1} parent=31 // pred_fallthru
        _
    $region32: #{inception_dwconv2d.1} parent=5 // pred_fallthru
      _
    %p2672 = scmp.le.s32.totalorder 2, %s9
    // Predicated region
    $region37: #{inception_dwconv2d.1} parent=5 // pred_check
      %p2673 = pneg %p2672
    $region38: #{inception_dwconv2d.1} parent=5 // pred_check_branch
      %2675 = sbr.rel (%p2673) target = $region40
    $region39: #{inception_dwconv2d.1} parent=5 // pred_region
      %s2676 = ssub.s32 %s9, 2
      // Predicated region
      $region41: #{inception_dwconv2d.1} parent=39 // pred_check
        %p2677 = pneg %p150
      $region42: #{inception_dwconv2d.1} parent=39 // pred_check_branch
        %2679 = sbr.rel (%p2677) target = $region44
      $region43: #{inception_dwconv2d.1} parent=39 // pred_region
        %s2680 = smul.u32 8, %s26
        %s2681 = smul.u32 2, %s27
        %p2682 = scmp.lt.s32.totalorder %s24, 1
        %s2683 = scalar_select %p2682, %s24, 1
        %p2684 = scmp.lt.s32.totalorder %s2680, 15
        %s2685 = scalar_select %p2684, %s2680, 15
        %p2686 = scmp.lt.s32.totalorder %s2681, 1
        %s2687 = scalar_select %p2686, %s2681, 1
        %p2688 = scmp.lt.s32.totalorder %s25, 0
        %s2689 = scalar_select %p2688, %s25, 0
        %s2690 = sadd.s32 %s2689, %s2687
        %s2691 = smul.addr %s2685, 2
        %s2692 = sadd.s32 %s2690, %s2691
        %s2693 = smul.addr %s2683, 32
        %s2694 = sadd.s32 %s2692, %s2693
        %s2695 = smul.addr %s2694, 8
        %s2696 = scalar_lea.vmem %s3, %s2695
      $region44: #{inception_dwconv2d.1} parent=39 // pred_fallthru
        _
    $region40: #{inception_dwconv2d.1} parent=5 // pred_fallthru
      _
  $region6: #{inception_dwconv2d.1} parent=0 // loop_footer
    %s13 = sadd.s32 1, %s9
  $region7: #{inception_dwconv2d.1} parent=0 // loop_footer_branch
    %8 = sbr.rel target = $region3
  $region8: #{inception_dwconv2d.1} parent=0 // loop_exit
    _

</llo_original>
